<compile_context>
chip_gen: v7x
topology: tpu7x:2x2x1
jax: 0.10.0
libtpu: 0.0.40
codegen_flags: <defaults>
</compile_context>

<pallas_src>
import jax
import jax.numpy as jnp
import numpy as np
from jax.experimental import pallas as pl
from jax.experimental.pallas import tpu as pltpu


def _round_up(x, m):
    return (x + m - 1) // m * m


def basenet_kernel(obs_ref, task_ref,
                   w1f_ref, b1f_ref, w2_ref, b2_ref,
                   wt_ref, bt_ref, wm_ref, bm_ref,
                   out_ref,
                   embs_scratch):
    """One batch tile: obs (tb, D), task (tb, T) -> out (tb, 256)."""
    n_enc = w2_ref.shape[0]
    H = w2_ref.shape[2]                                   # 128

    obs = obs_ref[...]                                    # (tb, D_in)
    task = task_ref[...]                                  # (tb, T)

    # ---- task encoder: Linear(taskid_dim, 128) --------------------------
    task_emb = (jnp.dot(task, wt_ref[...],
                        preferred_element_type=jnp.float32)
                + bt_ref[...])                            # (tb, 128) f32

    # ---- fused state-encoder layer 1: one (tb,D) x (D, n_enc*128) -------
    h_all = jnp.tanh(jnp.dot(obs, w1f_ref[...],
                             preferred_element_type=jnp.float32)
                     + b1f_ref[...])                      # (tb, n_enc*128)
    h_all = h_all.astype(w2_ref.dtype)

    # ---- per-encoder layer 2 + inline attention logit --------------------
    logits = []
    m = None
    for e in range(n_enc):                                # n_enc is small; static unroll
        h_e = h_all[:, e * H:(e + 1) * H]                 # lane-aligned static slice
        emb = (jnp.dot(h_e, w2_ref[e],
                       preferred_element_type=jnp.float32)
               + b2_ref[e:e + 1, :])                      # (tb, 128) f32
        embs_scratch[e] = emb
        logit = jnp.sum(emb * task_emb, axis=-1, keepdims=True)   # (tb, 1)
        logits.append(logit)
        m = logit if m is None else jnp.maximum(m, logit)

    # ---- softmax over the encoder axis (elementwise over the list) -------
    exps = [jnp.exp(l - m) for l in logits]               # each (tb, 1)
    denom = exps[0]
    for e in range(1, n_enc):
        denom = denom + exps[e]

    # ---- weighted sum of encoder embeddings (scratch read once each) -----
    acc = exps[0] * embs_scratch[0]
    for e in range(1, n_enc):
        acc = acc + exps[e] * embs_scratch[e]
    state_emb = acc * pl.reciprocal(denom, approx=False)  # (tb, 128)

    # ---- final mlp: Linear(128,128) -> Tanh ------------------------------
    state_emb = jnp.tanh(jnp.dot(state_emb.astype(wm_ref.dtype), wm_ref[...],
                                 preferred_element_type=jnp.float32)
                         + bm_ref[...])                   # (tb, 128)

    # ---- cat([task_emb, state_emb], dim=1): single lane-dense store ------
    out_ref[...] = jnp.concatenate([task_emb, state_emb],
                                   axis=1).astype(out_ref.dtype)


def basenet_forward(obs, taskid, params, *, tile_b=256, param_dtype=None):
    """Forward pass. param_dtype=jnp.bfloat16 is recommended on v6e/v7x."""
    B, D_in = obs.shape
    _, T = taskid.shape
    w1, b1, w2, b2, wt, bt, wm, bm = params
    n_enc, _, H = w2.shape

    # Fuse layer-1 weights once in the wrapper: (n_enc, D_in, H) -> (D_in, n_enc*H)
    w1f = jnp.transpose(w1, (1, 0, 2)).reshape(D_in, n_enc * H)
    b1f = b1.reshape(1, n_enc * H)

    if param_dtype is not None:
        cast = lambda a: a.astype(param_dtype)
        w1f, w2, wt, wm = cast(w1f), cast(w2), cast(wt), cast(wm)
        obs, taskid = cast(obs), cast(taskid)
    # biases stay f32 (added after f32 accumulation)

    # Batch tiling: clamp to the (padded) batch, keep a multiple of 8, pad ragged B.
    tile_b = max(8, min(int(tile_b), _round_up(B, 8)))
    tile_b = _round_up(tile_b, 8)
    Bp = _round_up(B, tile_b)
    if Bp != B:
        obs = jnp.pad(obs, ((0, Bp - B), (0, 0)))
        taskid = jnp.pad(taskid, ((0, Bp - B), (0, 0)))

    full = lambda shape: pl.BlockSpec(shape, lambda i: (0,) * len(shape))

    out = pl.pallas_call(
        basenet_kernel,
        out_shape=jax.ShapeDtypeStruct((Bp, 2 * H), jnp.float32),
        grid_spec=pltpu.PrefetchScalarGridSpec(
            num_scalar_prefetch=0,
            grid=(Bp // tile_b,),
            in_specs=[
                pl.BlockSpec((tile_b, D_in), lambda i: (i, 0)),   # obs
                pl.BlockSpec((tile_b, T), lambda i: (i, 0)),      # taskid
                full((D_in, n_enc * H)),                          # w1 fused
                full((1, n_enc * H)),                             # b1 fused
                full((n_enc, H, H)),                              # w2
                full((n_enc, H)),                                 # b2
                full((T, H)),                                     # wt
                full((1, H)),                                     # bt
                full((H, H)),                                     # wm
                full((1, H)),                                     # bm
            ],
            out_specs=pl.BlockSpec((tile_b, 2 * H), lambda i: (i, 0)),
            scratch_shapes=[pltpu.VMEM((n_enc, tile_b, H), jnp.float32)],
        ),
        compiler_params=pltpu.CompilerParams(
            dimension_semantics=("parallel",)),
    )(obs, taskid, w1f, b1f, w2, b2, wt, bt, wm, bm)

    return out[:B]


def basenet_reference(obs, taskid, params):
    """Pure-JAX reference mirroring the PyTorch forward."""
    w1, b1, w2, b2, wt, bt, wm, bm = params
    h = jnp.tanh(jnp.einsum('bd,edh->ebh', obs, w1) + b1[:, None, :])
    state_embs = jnp.einsum('ebh,ehk->ebk', h, w2) + b2[:, None, :]
    state_embs = jnp.transpose(state_embs, (1, 0, 2))              # (B, n_enc, 128)
    task_emb = taskid @ wt + bt[0]                                 # (B, 128)
    logits = jnp.einsum('bek,bk->be', state_embs, task_emb)        # (B, n_enc)
    w = jax.nn.softmax(logits, axis=1)
    state_emb = jnp.einsum('be,bek->bk', w, state_embs)            # (B, 128)
    state_emb = jnp.tanh(state_emb @ wm + bm[0])
    return jnp.concatenate([task_emb, state_emb], axis=1)


def init_params(key, input_dim, taskid_dim, n_encoder):
    """Deterministic PyTorch-Linear-style init (uniform +-1/sqrt(fan_in))."""
    ks = jax.random.split(key, 8)
    u = lambda k, shape, fan_in: jax.random.uniform(
        k, shape, jnp.float32, -1.0 / np.sqrt(fan_in), 1.0 / np.sqrt(fan_in))
    w1 = u(ks[0], (n_encoder, input_dim, 128), input_dim)
    b1 = u(ks[1], (n_encoder, 128), input_dim)
    w2 = u(ks[2], (n_encoder, 128, 128), 128)
    b2 = u(ks[3], (n_encoder, 128), 128)
    wt = u(ks[4], (taskid_dim, 128), taskid_dim)
    bt = u(ks[5], (1, 128), taskid_dim)
    wm = u(ks[6], (128, 128), 128)
    bm = u(ks[7], (1, 128), 128)
    return (w1, b1, w2, b2, wt, bt, wm, bm)


if __name__ == "__main__":
    # Small shapes consistent with the module: state_shape=(4, 8) -> input_dim=32.
    state_shape = (4, 8)
    input_dim = int(np.prod(state_shape))
    taskid_dim = 16
    n_encoder = 10

    key = jax.random.PRNGKey(0)
    k_obs, k_task, k_params = jax.random.split(key, 3)
    params = init_params(k_params, input_dim, taskid_dim, n_encoder)

    # ---- f32, batch=8 (single tile; tile_b auto-clamps) -------------------
    batch = 8
    obs = jax.random.normal(k_obs, (batch, input_dim), jnp.float32)
    taskid = jax.random.normal(k_task, (batch, taskid_dim), jnp.float32)
    out = jax.block_until_ready(basenet_forward(obs, taskid, params))
    ref = basenet_reference(obs, taskid, params)
    np.testing.assert_allclose(np.asarray(out), np.asarray(ref),
                               rtol=1e-5, atol=1e-5)
    assert out.shape == (batch, 256)

    # ---- ragged batch (20 rows, tile_b=8 -> padded to 24, 3 grid steps) ---
    batch2 = 20
    obs2 = jax.random.normal(jax.random.PRNGKey(1), (batch2, input_dim), jnp.float32)
    task2 = jax.random.normal(jax.random.PRNGKey(2), (batch2, taskid_dim), jnp.float32)
    out2 = jax.block_until_ready(basenet_forward(obs2, task2, params, tile_b=8))
    ref2 = basenet_reference(obs2, task2, params)
    np.testing.assert_allclose(np.asarray(out2), np.asarray(ref2),
                               rtol=1e-5, atol=1e-5)
    assert out2.shape == (batch2, 256)

    # ---- bf16 weight/activation path (recommended on v6e/v7x) ------------
    out3 = jax.block_until_ready(
        basenet_forward(obs, taskid, params, param_dtype=jnp.bfloat16))
    np.testing.assert_allclose(np.asarray(out3), np.asarray(ref),
                               rtol=5e-2, atol=5e-2)

    print("KERNEL_OK")
</pallas_src>

<mosaic_0001>
module attributes {stable_mosaic.version = 11 : i64} {
  func.func @basenet_kernel(%arg0: i32, %arg1: memref<8x32xf32, #tpu.memory_space<vmem>>, %arg2: memref<8x16xf32, #tpu.memory_space<vmem>>, %arg3: memref<32x1280xf32, #tpu.memory_space<vmem>>, %arg4: memref<1x1280xf32, #tpu.memory_space<vmem>>, %arg5: memref<10x128x128xf32, #tpu.memory_space<vmem>>, %arg6: memref<10x128xf32, #tpu.memory_space<vmem>>, %arg7: memref<16x128xf32, #tpu.memory_space<vmem>>, %arg8: memref<1x128xf32, #tpu.memory_space<vmem>>, %arg9: memref<128x128xf32, #tpu.memory_space<vmem>>, %arg10: memref<1x128xf32, #tpu.memory_space<vmem>>, %arg11: memref<8x256xf32, #tpu.memory_space<vmem>>, %arg12: memref<10x8x128xf32, #tpu.memory_space<vmem>>) attributes {dimension_semantics = [#tpu.dimension_semantics<parallel>], iteration_bounds = array<i64: 1>, scalar_prefetch = 0 : i64, scratch_operands = 1 : i64, tpu.core_type = #tpu.core_type<tc>, window_params = [{transform_indices = @transform_0, window_bounds = array<i64: 8, 32>}, {transform_indices = @transform_1, window_bounds = array<i64: 8, 16>}, {pipeline_mode = #tpu.pipeline_mode<synchronous>, transform_indices = @transform_2, window_bounds = array<i64: 32, 1280>}, {pipeline_mode = #tpu.pipeline_mode<synchronous>, transform_indices = @transform_3, window_bounds = array<i64: 1, 1280>}, {pipeline_mode = #tpu.pipeline_mode<synchronous>, transform_indices = @transform_4, window_bounds = array<i64: 10, 128, 128>}, {pipeline_mode = #tpu.pipeline_mode<synchronous>, transform_indices = @transform_5, window_bounds = array<i64: 10, 128>}, {pipeline_mode = #tpu.pipeline_mode<synchronous>, transform_indices = @transform_6, window_bounds = array<i64: 16, 128>}, {pipeline_mode = #tpu.pipeline_mode<synchronous>, transform_indices = @transform_7, window_bounds = array<i64: 1, 128>}, {pipeline_mode = #tpu.pipeline_mode<synchronous>, transform_indices = @transform_8, window_bounds = array<i64: 128, 128>}, {pipeline_mode = #tpu.pipeline_mode<synchronous>, transform_indices = @transform_9, window_bounds = array<i64: 1, 128>}, {transform_indices = @transform_10, window_bounds = array<i64: 8, 256>}]} {
    %c0 = arith.constant 0 : index
    %c0_0 = arith.constant 0 : index
    %0 = vector.load %arg1[%c0, %c0_0] : memref<8x32xf32, #tpu.memory_space<vmem>>, vector<8x32xf32>
    %c0_1 = arith.constant 0 : index
    %c0_2 = arith.constant 0 : index
    %1 = vector.load %arg2[%c0_1, %c0_2] : memref<8x16xf32, #tpu.memory_space<vmem>>, vector<8x16xf32>
    %c0_3 = arith.constant 0 : index
    %c0_4 = arith.constant 0 : index
    %2 = vector.load %arg7[%c0_3, %c0_4] : memref<16x128xf32, #tpu.memory_space<vmem>>, vector<16x128xf32>
    %cst = arith.constant dense<0.000000e+00> : vector<8x128xf32>
    %3 = tpu.matmul %1, %2, %cst {dimension_numbers = #tpu.dot_dimension_numbers<[1], [0], [0], [1], [0, 0, 1, 1], [], []>} : vector<8x16xf32>, vector<16x128xf32>, vector<8x128xf32> -> vector<8x128xf32>
    %c0_5 = arith.constant 0 : index
    %c0_6 = arith.constant 0 : index
    %4 = vector.load %arg8[%c0_5, %c0_6] : memref<1x128xf32, #tpu.memory_space<vmem>>, vector<1x128xf32>
    %5 = vector.broadcast %4 : vector<1x128xf32> to vector<8x128xf32>
    %6 = arith.addf %3, %5 : vector<8x128xf32>
    %c0_7 = arith.constant 0 : index
    %c0_8 = arith.constant 0 : index
    %7 = vector.load %arg3[%c0_7, %c0_8] : memref<32x1280xf32, #tpu.memory_space<vmem>>, vector<32x1280xf32>
    %cst_9 = arith.constant dense<0.000000e+00> : vector<8x1280xf32>
    %8 = tpu.matmul %0, %7, %cst_9 {dimension_numbers = #tpu.dot_dimension_numbers<[1], [0], [0], [1], [0, 0, 1, 1], [], []>} : vector<8x32xf32>, vector<32x1280xf32>, vector<8x1280xf32> -> vector<8x1280xf32>
    %c0_10 = arith.constant 0 : index
    %c0_11 = arith.constant 0 : index
    %9 = vector.load %arg4[%c0_10, %c0_11] : memref<1x1280xf32, #tpu.memory_space<vmem>>, vector<1x1280xf32>
    %10 = vector.broadcast %9 : vector<1x1280xf32> to vector<8x1280xf32>
    %11 = arith.addf %8, %10 : vector<8x1280xf32>
    %12 = math.tanh %11 : vector<8x1280xf32>
    %13 = vector.extract_strided_slice %12 {offsets = [0, 0], sizes = [8, 128], strides = [1, 1]} : vector<8x1280xf32> to vector<8x128xf32>
    %c0_12 = arith.constant 0 : index
    %c0_13 = arith.constant 0 : index
    %c0_14 = arith.constant 0 : index
    %14 = vector.load %arg5[%c0_12, %c0_13, %c0_14] : memref<10x128x128xf32, #tpu.memory_space<vmem>>, vector<1x128x128xf32>
    %15 = vector.shape_cast %14 : vector<1x128x128xf32> to vector<128x128xf32>
    %cst_15 = arith.constant dense<0.000000e+00> : vector<8x128xf32>
    %16 = tpu.matmul %13, %15, %cst_15 {dimension_numbers = #tpu.dot_dimension_numbers<[1], [0], [0], [1], [0, 0, 1, 1], [], []>} : vector<8x128xf32>, vector<128x128xf32>, vector<8x128xf32> -> vector<8x128xf32>
    %c0_16 = arith.constant 0 : index
    %c0_17 = arith.constant 0 : index
    %17 = vector.load %arg6[%c0_16, %c0_17] : memref<10x128xf32, #tpu.memory_space<vmem>>, vector<1x128xf32>
    %18 = vector.broadcast %17 : vector<1x128xf32> to vector<8x128xf32>
    %19 = arith.addf %16, %18 : vector<8x128xf32>
    %c0_18 = arith.constant 0 : index
    %c0_19 = arith.constant 0 : index
    %c0_20 = arith.constant 0 : index
    %20 = vector.load %arg12[%c0_18, %c0_19, %c0_20] : memref<10x8x128xf32, #tpu.memory_space<vmem>>, vector<1x8x128xf32>
    %21 = vector.shape_cast %20 : vector<1x8x128xf32> to vector<8x128xf32>
    %22 = vector.shape_cast %19 : vector<8x128xf32> to vector<1x8x128xf32>
    tpu.vector_store %arg12[%c0_18, %c0_19, %c0_20], %22 {strides = array<i32>} : memref<10x8x128xf32, #tpu.memory_space<vmem>>, vector<1x8x128xf32>,
    %23 = arith.mulf %19, %6 : vector<8x128xf32>
    %cst_21 = arith.constant dense<0.000000e+00> : vector<8xf32>
    %24 = vector.multi_reduction <add>, %23, %cst_21 [1] : vector<8x128xf32> to vector<8xf32>
    %25 = vector.shape_cast %24 : vector<8xf32> to vector<8x1xf32>
    %26 = vector.extract_strided_slice %12 {offsets = [0, 128], sizes = [8, 128], strides = [1, 1]} : vector<8x1280xf32> to vector<8x128xf32>
    %c1 = arith.constant 1 : index
    %c0_22 = arith.constant 0 : index
    %c0_23 = arith.constant 0 : index
    %27 = vector.load %arg5[%c1, %c0_22, %c0_23] : memref<10x128x128xf32, #tpu.memory_space<vmem>>, vector<1x128x128xf32>
    %28 = vector.shape_cast %27 : vector<1x128x128xf32> to vector<128x128xf32>
    %cst_24 = arith.constant dense<0.000000e+00> : vector<8x128xf32>
    %29 = tpu.matmul %26, %28, %cst_24 {dimension_numbers = #tpu.dot_dimension_numbers<[1], [0], [0], [1], [0, 0, 1, 1], [], []>} : vector<8x128xf32>, vector<128x128xf32>, vector<8x128xf32> -> vector<8x128xf32>
    %c1_25 = arith.constant 1 : index
    %c0_26 = arith.constant 0 : index
    %30 = vector.load %arg6[%c1_25, %c0_26] : memref<10x128xf32, #tpu.memory_space<vmem>>, vector<1x128xf32>
    %31 = vector.broadcast %30 : vector<1x128xf32> to vector<8x128xf32>
    %32 = arith.addf %29, %31 : vector<8x128xf32>
    %c1_27 = arith.constant 1 : index
    %c0_28 = arith.constant 0 : index
    %c0_29 = arith.constant 0 : index
    %33 = vector.load %arg12[%c1_27, %c0_28, %c0_29] : memref<10x8x128xf32, #tpu.memory_space<vmem>>, vector<1x8x128xf32>
    %34 = vector.shape_cast %33 : vector<1x8x128xf32> to vector<8x128xf32>
    %35 = vector.shape_cast %32 : vector<8x128xf32> to vector<1x8x128xf32>
    tpu.vector_store %arg12[%c1_27, %c0_28, %c0_29], %35 {strides = array<i32>} : memref<10x8x128xf32, #tpu.memory_space<vmem>>, vector<1x8x128xf32>,
    %36 = arith.mulf %32, %6 : vector<8x128xf32>
    %cst_30 = arith.constant dense<0.000000e+00> : vector<8xf32>
    %37 = vector.multi_reduction <add>, %36, %cst_30 [1] : vector<8x128xf32> to vector<8xf32>
    %38 = vector.shape_cast %37 : vector<8xf32> to vector<8x1xf32>
    %39 = arith.maximumf %25, %38 : vector<8x1xf32>
    %40 = vector.extract_strided_slice %12 {offsets = [0, 256], sizes = [8, 128], strides = [1, 1]} : vector<8x1280xf32> to vector<8x128xf32>
    %c2 = arith.constant 2 : index
    %c0_31 = arith.constant 0 : index
    %c0_32 = arith.constant 0 : index
    %41 = vector.load %arg5[%c2, %c0_31, %c0_32] : memref<10x128x128xf32, #tpu.memory_space<vmem>>, vector<1x128x128xf32>
    %42 = vector.shape_cast %41 : vector<1x128x128xf32> to vector<128x128xf32>
    %cst_33 = arith.constant dense<0.000000e+00> : vector<8x128xf32>
    %43 = tpu.matmul %40, %42, %cst_33 {dimension_numbers = #tpu.dot_dimension_numbers<[1], [0], [0], [1], [0, 0, 1, 1], [], []>} : vector<8x128xf32>, vector<128x128xf32>, vector<8x128xf32> -> vector<8x128xf32>
    %c2_34 = arith.constant 2 : index
    %c0_35 = arith.constant 0 : index
    %44 = vector.load %arg6[%c2_34, %c0_35] : memref<10x128xf32, #tpu.memory_space<vmem>>, vector<1x128xf32>
    %45 = vector.broadcast %44 : vector<1x128xf32> to vector<8x128xf32>
    %46 = arith.addf %43, %45 : vector<8x128xf32>
    %c2_36 = arith.constant 2 : index
    %c0_37 = arith.constant 0 : index
    %c0_38 = arith.constant 0 : index
    %47 = vector.load %arg12[%c2_36, %c0_37, %c0_38] : memref<10x8x128xf32, #tpu.memory_space<vmem>>, vector<1x8x128xf32>
    %48 = vector.shape_cast %47 : vector<1x8x128xf32> to vector<8x128xf32>
    %49 = vector.shape_cast %46 : vector<8x128xf32> to vector<1x8x128xf32>
    tpu.vector_store %arg12[%c2_36, %c0_37, %c0_38], %49 {strides = array<i32>} : memref<10x8x128xf32, #tpu.memory_space<vmem>>, vector<1x8x128xf32>,
    %50 = arith.mulf %46, %6 : vector<8x128xf32>
    %cst_39 = arith.constant dense<0.000000e+00> : vector<8xf32>
    %51 = vector.multi_reduction <add>, %50, %cst_39 [1] : vector<8x128xf32> to vector<8xf32>
    %52 = vector.shape_cast %51 : vector<8xf32> to vector<8x1xf32>
    %53 = arith.maximumf %39, %52 : vector<8x1xf32>
    %54 = vector.extract_strided_slice %12 {offsets = [0, 384], sizes = [8, 128], strides = [1, 1]} : vector<8x1280xf32> to vector<8x128xf32>
    %c3 = arith.constant 3 : index
    %c0_40 = arith.constant 0 : index
    %c0_41 = arith.constant 0 : index
    %55 = vector.load %arg5[%c3, %c0_40, %c0_41] : memref<10x128x128xf32, #tpu.memory_space<vmem>>, vector<1x128x128xf32>
    %56 = vector.shape_cast %55 : vector<1x128x128xf32> to vector<128x128xf32>
    %cst_42 = arith.constant dense<0.000000e+00> : vector<8x128xf32>
    %57 = tpu.matmul %54, %56, %cst_42 {dimension_numbers = #tpu.dot_dimension_numbers<[1], [0], [0], [1], [0, 0, 1, 1], [], []>} : vector<8x128xf32>, vector<128x128xf32>, vector<8x128xf32> -> vector<8x128xf32>
    %c3_43 = arith.constant 3 : index
    %c0_44 = arith.constant 0 : index
    %58 = vector.load %arg6[%c3_43, %c0_44] : memref<10x128xf32, #tpu.memory_space<vmem>>, vector<1x128xf32>
    %59 = vector.broadcast %58 : vector<1x128xf32> to vector<8x128xf32>
    %60 = arith.addf %57, %59 : vector<8x128xf32>
    %c3_45 = arith.constant 3 : index
    %c0_46 = arith.constant 0 : index
    %c0_47 = arith.constant 0 : index
    %61 = vector.load %arg12[%c3_45, %c0_46, %c0_47] : memref<10x8x128xf32, #tpu.memory_space<vmem>>, vector<1x8x128xf32>
    %62 = vector.shape_cast %61 : vector<1x8x128xf32> to vector<8x128xf32>
    %63 = vector.shape_cast %60 : vector<8x128xf32> to vector<1x8x128xf32>
    tpu.vector_store %arg12[%c3_45, %c0_46, %c0_47], %63 {strides = array<i32>} : memref<10x8x128xf32, #tpu.memory_space<vmem>>, vector<1x8x128xf32>,
    %64 = arith.mulf %60, %6 : vector<8x128xf32>
    %cst_48 = arith.constant dense<0.000000e+00> : vector<8xf32>
    %65 = vector.multi_reduction <add>, %64, %cst_48 [1] : vector<8x128xf32> to vector<8xf32>
    %66 = vector.shape_cast %65 : vector<8xf32> to vector<8x1xf32>
    %67 = arith.maximumf %53, %66 : vector<8x1xf32>
    %68 = vector.extract_strided_slice %12 {offsets = [0, 512], sizes = [8, 128], strides = [1, 1]} : vector<8x1280xf32> to vector<8x128xf32>
    %c4 = arith.constant 4 : index
    %c0_49 = arith.constant 0 : index
    %c0_50 = arith.constant 0 : index
    %69 = vector.load %arg5[%c4, %c0_49, %c0_50] : memref<10x128x128xf32, #tpu.memory_space<vmem>>, vector<1x128x128xf32>
    %70 = vector.shape_cast %69 : vector<1x128x128xf32> to vector<128x128xf32>
    %cst_51 = arith.constant dense<0.000000e+00> : vector<8x128xf32>
    %71 = tpu.matmul %68, %70, %cst_51 {dimension_numbers = #tpu.dot_dimension_numbers<[1], [0], [0], [1], [0, 0, 1, 1], [], []>} : vector<8x128xf32>, vector<128x128xf32>, vector<8x128xf32> -> vector<8x128xf32>
    %c4_52 = arith.constant 4 : index
    %c0_53 = arith.constant 0 : index
    %72 = vector.load %arg6[%c4_52, %c0_53] : memref<10x128xf32, #tpu.memory_space<vmem>>, vector<1x128xf32>
    %73 = vector.broadcast %72 : vector<1x128xf32> to vector<8x128xf32>
    %74 = arith.addf %71, %73 : vector<8x128xf32>
    %c4_54 = arith.constant 4 : index
    %c0_55 = arith.constant 0 : index
    %c0_56 = arith.constant 0 : index
    %75 = vector.load %arg12[%c4_54, %c0_55, %c0_56] : memref<10x8x128xf32, #tpu.memory_space<vmem>>, vector<1x8x128xf32>
    %76 = vector.shape_cast %75 : vector<1x8x128xf32> to vector<8x128xf32>
    %77 = vector.shape_cast %74 : vector<8x128xf32> to vector<1x8x128xf32>
    tpu.vector_store %arg12[%c4_54, %c0_55, %c0_56], %77 {strides = array<i32>} : memref<10x8x128xf32, #tpu.memory_space<vmem>>, vector<1x8x128xf32>,
    %78 = arith.mulf %74, %6 : vector<8x128xf32>
    %cst_57 = arith.constant dense<0.000000e+00> : vector<8xf32>
    %79 = vector.multi_reduction <add>, %78, %cst_57 [1] : vector<8x128xf32> to vector<8xf32>
    %80 = vector.shape_cast %79 : vector<8xf32> to vector<8x1xf32>
    %81 = arith.maximumf %67, %80 : vector<8x1xf32>
    %82 = vector.extract_strided_slice %12 {offsets = [0, 640], sizes = [8, 128], strides = [1, 1]} : vector<8x1280xf32> to vector<8x128xf32>
    %c5 = arith.constant 5 : index
    %c0_58 = arith.constant 0 : index
    %c0_59 = arith.constant 0 : index
    %83 = vector.load %arg5[%c5, %c0_58, %c0_59] : memref<10x128x128xf32, #tpu.memory_space<vmem>>, vector<1x128x128xf32>
    %84 = vector.shape_cast %83 : vector<1x128x128xf32> to vector<128x128xf32>
    %cst_60 = arith.constant dense<0.000000e+00> : vector<8x128xf32>
    %85 = tpu.matmul %82, %84, %cst_60 {dimension_numbers = #tpu.dot_dimension_numbers<[1], [0], [0], [1], [0, 0, 1, 1], [], []>} : vector<8x128xf32>, vector<128x128xf32>, vector<8x128xf32> -> vector<8x128xf32>
    %c5_61 = arith.constant 5 : index
    %c0_62 = arith.constant 0 : index
    %86 = vector.load %arg6[%c5_61, %c0_62] : memref<10x128xf32, #tpu.memory_space<vmem>>, vector<1x128xf32>
    %87 = vector.broadcast %86 : vector<1x128xf32> to vector<8x128xf32>
    %88 = arith.addf %85, %87 : vector<8x128xf32>
    %c5_63 = arith.constant 5 : index
    %c0_64 = arith.constant 0 : index
    %c0_65 = arith.constant 0 : index
    %89 = vector.load %arg12[%c5_63, %c0_64, %c0_65] : memref<10x8x128xf32, #tpu.memory_space<vmem>>, vector<1x8x128xf32>
    %90 = vector.shape_cast %89 : vector<1x8x128xf32> to vector<8x128xf32>
    %91 = vector.shape_cast %88 : vector<8x128xf32> to vector<1x8x128xf32>
    tpu.vector_store %arg12[%c5_63, %c0_64, %c0_65], %91 {strides = array<i32>} : memref<10x8x128xf32, #tpu.memory_space<vmem>>, vector<1x8x128xf32>,
    %92 = arith.mulf %88, %6 : vector<8x128xf32>
    %cst_66 = arith.constant dense<0.000000e+00> : vector<8xf32>
    %93 = vector.multi_reduction <add>, %92, %cst_66 [1] : vector<8x128xf32> to vector<8xf32>
    %94 = vector.shape_cast %93 : vector<8xf32> to vector<8x1xf32>
    %95 = arith.maximumf %81, %94 : vector<8x1xf32>
    %96 = vector.extract_strided_slice %12 {offsets = [0, 768], sizes = [8, 128], strides = [1, 1]} : vector<8x1280xf32> to vector<8x128xf32>
    %c6 = arith.constant 6 : index
    %c0_67 = arith.constant 0 : index
    %c0_68 = arith.constant 0 : index
    %97 = vector.load %arg5[%c6, %c0_67, %c0_68] : memref<10x128x128xf32, #tpu.memory_space<vmem>>, vector<1x128x128xf32>
    %98 = vector.shape_cast %97 : vector<1x128x128xf32> to vector<128x128xf32>
    %cst_69 = arith.constant dense<0.000000e+00> : vector<8x128xf32>
    %99 = tpu.matmul %96, %98, %cst_69 {dimension_numbers = #tpu.dot_dimension_numbers<[1], [0], [0], [1], [0, 0, 1, 1], [], []>} : vector<8x128xf32>, vector<128x128xf32>, vector<8x128xf32> -> vector<8x128xf32>
    %c6_70 = arith.constant 6 : index
    %c0_71 = arith.constant 0 : index
    %100 = vector.load %arg6[%c6_70, %c0_71] : memref<10x128xf32, #tpu.memory_space<vmem>>, vector<1x128xf32>
    %101 = vector.broadcast %100 : vector<1x128xf32> to vector<8x128xf32>
    %102 = arith.addf %99, %101 : vector<8x128xf32>
    %c6_72 = arith.constant 6 : index
    %c0_73 = arith.constant 0 : index
    %c0_74 = arith.constant 0 : index
    %103 = vector.load %arg12[%c6_72, %c0_73, %c0_74] : memref<10x8x128xf32, #tpu.memory_space<vmem>>, vector<1x8x128xf32>
    %104 = vector.shape_cast %103 : vector<1x8x128xf32> to vector<8x128xf32>
    %105 = vector.shape_cast %102 : vector<8x128xf32> to vector<1x8x128xf32>
    tpu.vector_store %arg12[%c6_72, %c0_73, %c0_74], %105 {strides = array<i32>} : memref<10x8x128xf32, #tpu.memory_space<vmem>>, vector<1x8x128xf32>,
    %106 = arith.mulf %102, %6 : vector<8x128xf32>
    %cst_75 = arith.constant dense<0.000000e+00> : vector<8xf32>
    %107 = vector.multi_reduction <add>, %106, %cst_75 [1] : vector<8x128xf32> to vector<8xf32>
    %108 = vector.shape_cast %107 : vector<8xf32> to vector<8x1xf32>
    %109 = arith.maximumf %95, %108 : vector<8x1xf32>
    %110 = vector.extract_strided_slice %12 {offsets = [0, 896], sizes = [8, 128], strides = [1, 1]} : vector<8x1280xf32> to vector<8x128xf32>
    %c7 = arith.constant 7 : index
    %c0_76 = arith.constant 0 : index
    %c0_77 = arith.constant 0 : index
    %111 = vector.load %arg5[%c7, %c0_76, %c0_77] : memref<10x128x128xf32, #tpu.memory_space<vmem>>, vector<1x128x128xf32>
    %112 = vector.shape_cast %111 : vector<1x128x128xf32> to vector<128x128xf32>
    %cst_78 = arith.constant dense<0.000000e+00> : vector<8x128xf32>
    %113 = tpu.matmul %110, %112, %cst_78 {dimension_numbers = #tpu.dot_dimension_numbers<[1], [0], [0], [1], [0, 0, 1, 1], [], []>} : vector<8x128xf32>, vector<128x128xf32>, vector<8x128xf32> -> vector<8x128xf32>
    %c7_79 = arith.constant 7 : index
    %c0_80 = arith.constant 0 : index
    %114 = vector.load %arg6[%c7_79, %c0_80] : memref<10x128xf32, #tpu.memory_space<vmem>>, vector<1x128xf32>
    %115 = vector.broadcast %114 : vector<1x128xf32> to vector<8x128xf32>
    %116 = arith.addf %113, %115 : vector<8x128xf32>
    %c7_81 = arith.constant 7 : index
    %c0_82 = arith.constant 0 : index
    %c0_83 = arith.constant 0 : index
    %117 = vector.load %arg12[%c7_81, %c0_82, %c0_83] : memref<10x8x128xf32, #tpu.memory_space<vmem>>, vector<1x8x128xf32>
    %118 = vector.shape_cast %117 : vector<1x8x128xf32> to vector<8x128xf32>
    %119 = vector.shape_cast %116 : vector<8x128xf32> to vector<1x8x128xf32>
    tpu.vector_store %arg12[%c7_81, %c0_82, %c0_83], %119 {strides = array<i32>} : memref<10x8x128xf32, #tpu.memory_space<vmem>>, vector<1x8x128xf32>,
    %120 = arith.mulf %116, %6 : vector<8x128xf32>
    %cst_84 = arith.constant dense<0.000000e+00> : vector<8xf32>
    %121 = vector.multi_reduction <add>, %120, %cst_84 [1] : vector<8x128xf32> to vector<8xf32>
    %122 = vector.shape_cast %121 : vector<8xf32> to vector<8x1xf32>
    %123 = arith.maximumf %109, %122 : vector<8x1xf32>
    %124 = vector.extract_strided_slice %12 {offsets = [0, 1024], sizes = [8, 128], strides = [1, 1]} : vector<8x1280xf32> to vector<8x128xf32>
    %c8 = arith.constant 8 : index
    %c0_85 = arith.constant 0 : index
    %c0_86 = arith.constant 0 : index
    %125 = vector.load %arg5[%c8, %c0_85, %c0_86] : memref<10x128x128xf32, #tpu.memory_space<vmem>>, vector<1x128x128xf32>
    %126 = vector.shape_cast %125 : vector<1x128x128xf32> to vector<128x128xf32>
    %cst_87 = arith.constant dense<0.000000e+00> : vector<8x128xf32>
    %127 = tpu.matmul %124, %126, %cst_87 {dimension_numbers = #tpu.dot_dimension_numbers<[1], [0], [0], [1], [0, 0, 1, 1], [], []>} : vector<8x128xf32>, vector<128x128xf32>, vector<8x128xf32> -> vector<8x128xf32>
    %c8_88 = arith.constant 8 : index
    %c0_89 = arith.constant 0 : index
    %128 = vector.load %arg6[%c8_88, %c0_89] : memref<10x128xf32, #tpu.memory_space<vmem>>, vector<1x128xf32>
    %129 = vector.broadcast %128 : vector<1x128xf32> to vector<8x128xf32>
    %130 = arith.addf %127, %129 : vector<8x128xf32>
    %c8_90 = arith.constant 8 : index
    %c0_91 = arith.constant 0 : index
    %c0_92 = arith.constant 0 : index
    %131 = vector.load %arg12[%c8_90, %c0_91, %c0_92] : memref<10x8x128xf32, #tpu.memory_space<vmem>>, vector<1x8x128xf32>
    %132 = vector.shape_cast %131 : vector<1x8x128xf32> to vector<8x128xf32>
    %133 = vector.shape_cast %130 : vector<8x128xf32> to vector<1x8x128xf32>
    tpu.vector_store %arg12[%c8_90, %c0_91, %c0_92], %133 {strides = array<i32>} : memref<10x8x128xf32, #tpu.memory_space<vmem>>, vector<1x8x128xf32>,
    %134 = arith.mulf %130, %6 : vector<8x128xf32>
    %cst_93 = arith.constant dense<0.000000e+00> : vector<8xf32>
    %135 = vector.multi_reduction <add>, %134, %cst_93 [1] : vector<8x128xf32> to vector<8xf32>
    %136 = vector.shape_cast %135 : vector<8xf32> to vector<8x1xf32>
    %137 = arith.maximumf %123, %136 : vector<8x1xf32>
    %138 = vector.extract_strided_slice %12 {offsets = [0, 1152], sizes = [8, 128], strides = [1, 1]} : vector<8x1280xf32> to vector<8x128xf32>
    %c9 = arith.constant 9 : index
    %c0_94 = arith.constant 0 : index
    %c0_95 = arith.constant 0 : index
    %139 = vector.load %arg5[%c9, %c0_94, %c0_95] : memref<10x128x128xf32, #tpu.memory_space<vmem>>, vector<1x128x128xf32>
    %140 = vector.shape_cast %139 : vector<1x128x128xf32> to vector<128x128xf32>
    %cst_96 = arith.constant dense<0.000000e+00> : vector<8x128xf32>
    %141 = tpu.matmul %138, %140, %cst_96 {dimension_numbers = #tpu.dot_dimension_numbers<[1], [0], [0], [1], [0, 0, 1, 1], [], []>} : vector<8x128xf32>, vector<128x128xf32>, vector<8x128xf32> -> vector<8x128xf32>
    %c9_97 = arith.constant 9 : index
    %c0_98 = arith.constant 0 : index
    %142 = vector.load %arg6[%c9_97, %c0_98] : memref<10x128xf32, #tpu.memory_space<vmem>>, vector<1x128xf32>
    %143 = vector.broadcast %142 : vector<1x128xf32> to vector<8x128xf32>
    %144 = arith.addf %141, %143 : vector<8x128xf32>
    %c9_99 = arith.constant 9 : index
    %c0_100 = arith.constant 0 : index
    %c0_101 = arith.constant 0 : index
    %145 = vector.load %arg12[%c9_99, %c0_100, %c0_101] : memref<10x8x128xf32, #tpu.memory_space<vmem>>, vector<1x8x128xf32>
    %146 = vector.shape_cast %145 : vector<1x8x128xf32> to vector<8x128xf32>
    %147 = vector.shape_cast %144 : vector<8x128xf32> to vector<1x8x128xf32>
    tpu.vector_store %arg12[%c9_99, %c0_100, %c0_101], %147 {strides = array<i32>} : memref<10x8x128xf32, #tpu.memory_space<vmem>>, vector<1x8x128xf32>,
    %148 = arith.mulf %144, %6 : vector<8x128xf32>
    %cst_102 = arith.constant dense<0.000000e+00> : vector<8xf32>
    %149 = vector.multi_reduction <add>, %148, %cst_102 [1] : vector<8x128xf32> to vector<8xf32>
    %150 = vector.shape_cast %149 : vector<8xf32> to vector<8x1xf32>
    %151 = arith.maximumf %137, %150 : vector<8x1xf32>
    %152 = arith.subf %25, %151 : vector<8x1xf32>
    %153 = math.exp %152 : vector<8x1xf32>
    %154 = arith.subf %38, %151 : vector<8x1xf32>
    %155 = math.exp %154 : vector<8x1xf32>
    %156 = arith.subf %52, %151 : vector<8x1xf32>
    %157 = math.exp %156 : vector<8x1xf32>
    %158 = arith.subf %66, %151 : vector<8x1xf32>
    %159 = math.exp %158 : vector<8x1xf32>
    %160 = arith.subf %80, %151 : vector<8x1xf32>
    %161 = math.exp %160 : vector<8x1xf32>
    %162 = arith.subf %94, %151 : vector<8x1xf32>
    %163 = math.exp %162 : vector<8x1xf32>
    %164 = arith.subf %108, %151 : vector<8x1xf32>
    %165 = math.exp %164 : vector<8x1xf32>
    %166 = arith.subf %122, %151 : vector<8x1xf32>
    %167 = math.exp %166 : vector<8x1xf32>
    %168 = arith.subf %136, %151 : vector<8x1xf32>
    %169 = math.exp %168 : vector<8x1xf32>
    %170 = arith.subf %150, %151 : vector<8x1xf32>
    %171 = math.exp %170 : vector<8x1xf32>
    %172 = arith.addf %153, %155 : vector<8x1xf32>
    %173 = arith.addf %172, %157 : vector<8x1xf32>
    %174 = arith.addf %173, %159 : vector<8x1xf32>
    %175 = arith.addf %174, %161 : vector<8x1xf32>
    %176 = arith.addf %175, %163 : vector<8x1xf32>
    %177 = arith.addf %176, %165 : vector<8x1xf32>
    %178 = arith.addf %177, %167 : vector<8x1xf32>
    %179 = arith.addf %178, %169 : vector<8x1xf32>
    %180 = arith.addf %179, %171 : vector<8x1xf32>
    %c0_103 = arith.constant 0 : index
    %c0_104 = arith.constant 0 : index
    %c0_105 = arith.constant 0 : index
    %181 = vector.load %arg12[%c0_103, %c0_104, %c0_105] : memref<10x8x128xf32, #tpu.memory_space<vmem>>, vector<1x8x128xf32>
    %182 = vector.shape_cast %181 : vector<1x8x128xf32> to vector<8x128xf32>
    %183 = vector.broadcast %153 : vector<8x1xf32> to vector<8x128xf32>
    %184 = arith.mulf %183, %182 : vector<8x128xf32>
    %c1_106 = arith.constant 1 : index
    %c0_107 = arith.constant 0 : index
    %c0_108 = arith.constant 0 : index
    %185 = vector.load %arg12[%c1_106, %c0_107, %c0_108] : memref<10x8x128xf32, #tpu.memory_space<vmem>>, vector<1x8x128xf32>
    %186 = vector.shape_cast %185 : vector<1x8x128xf32> to vector<8x128xf32>
    %187 = vector.broadcast %155 : vector<8x1xf32> to vector<8x128xf32>
    %188 = arith.mulf %187, %186 : vector<8x128xf32>
    %189 = arith.addf %184, %188 : vector<8x128xf32>
    %c2_109 = arith.constant 2 : index
    %c0_110 = arith.constant 0 : index
    %c0_111 = arith.constant 0 : index
    %190 = vector.load %arg12[%c2_109, %c0_110, %c0_111] : memref<10x8x128xf32, #tpu.memory_space<vmem>>, vector<1x8x128xf32>
    %191 = vector.shape_cast %190 : vector<1x8x128xf32> to vector<8x128xf32>
    %192 = vector.broadcast %157 : vector<8x1xf32> to vector<8x128xf32>
    %193 = arith.mulf %192, %191 : vector<8x128xf32>
    %194 = arith.addf %189, %193 : vector<8x128xf32>
    %c3_112 = arith.constant 3 : index
    %c0_113 = arith.constant 0 : index
    %c0_114 = arith.constant 0 : index
    %195 = vector.load %arg12[%c3_112, %c0_113, %c0_114] : memref<10x8x128xf32, #tpu.memory_space<vmem>>, vector<1x8x128xf32>
    %196 = vector.shape_cast %195 : vector<1x8x128xf32> to vector<8x128xf32>
    %197 = vector.broadcast %159 : vector<8x1xf32> to vector<8x128xf32>
    %198 = arith.mulf %197, %196 : vector<8x128xf32>
    %199 = arith.addf %194, %198 : vector<8x128xf32>
    %c4_115 = arith.constant 4 : index
    %c0_116 = arith.constant 0 : index
    %c0_117 = arith.constant 0 : index
    %200 = vector.load %arg12[%c4_115, %c0_116, %c0_117] : memref<10x8x128xf32, #tpu.memory_space<vmem>>, vector<1x8x128xf32>
    %201 = vector.shape_cast %200 : vector<1x8x128xf32> to vector<8x128xf32>
    %202 = vector.broadcast %161 : vector<8x1xf32> to vector<8x128xf32>
    %203 = arith.mulf %202, %201 : vector<8x128xf32>
    %204 = arith.addf %199, %203 : vector<8x128xf32>
    %c5_118 = arith.constant 5 : index
    %c0_119 = arith.constant 0 : index
    %c0_120 = arith.constant 0 : index
    %205 = vector.load %arg12[%c5_118, %c0_119, %c0_120] : memref<10x8x128xf32, #tpu.memory_space<vmem>>, vector<1x8x128xf32>
    %206 = vector.shape_cast %205 : vector<1x8x128xf32> to vector<8x128xf32>
    %207 = vector.broadcast %163 : vector<8x1xf32> to vector<8x128xf32>
    %208 = arith.mulf %207, %206 : vector<8x128xf32>
    %209 = arith.addf %204, %208 : vector<8x128xf32>
    %c6_121 = arith.constant 6 : index
    %c0_122 = arith.constant 0 : index
    %c0_123 = arith.constant 0 : index
    %210 = vector.load %arg12[%c6_121, %c0_122, %c0_123] : memref<10x8x128xf32, #tpu.memory_space<vmem>>, vector<1x8x128xf32>
    %211 = vector.shape_cast %210 : vector<1x8x128xf32> to vector<8x128xf32>
    %212 = vector.broadcast %165 : vector<8x1xf32> to vector<8x128xf32>
    %213 = arith.mulf %212, %211 : vector<8x128xf32>
    %214 = arith.addf %209, %213 : vector<8x128xf32>
    %c7_124 = arith.constant 7 : index
    %c0_125 = arith.constant 0 : index
    %c0_126 = arith.constant 0 : index
    %215 = vector.load %arg12[%c7_124, %c0_125, %c0_126] : memref<10x8x128xf32, #tpu.memory_space<vmem>>, vector<1x8x128xf32>
    %216 = vector.shape_cast %215 : vector<1x8x128xf32> to vector<8x128xf32>
    %217 = vector.broadcast %167 : vector<8x1xf32> to vector<8x128xf32>
    %218 = arith.mulf %217, %216 : vector<8x128xf32>
    %219 = arith.addf %214, %218 : vector<8x128xf32>
    %c8_127 = arith.constant 8 : index
    %c0_128 = arith.constant 0 : index
    %c0_129 = arith.constant 0 : index
    %220 = vector.load %arg12[%c8_127, %c0_128, %c0_129] : memref<10x8x128xf32, #tpu.memory_space<vmem>>, vector<1x8x128xf32>
    %221 = vector.shape_cast %220 : vector<1x8x128xf32> to vector<8x128xf32>
    %222 = vector.broadcast %169 : vector<8x1xf32> to vector<8x128xf32>
    %223 = arith.mulf %222, %221 : vector<8x128xf32>
    %224 = arith.addf %219, %223 : vector<8x128xf32>
    %c9_130 = arith.constant 9 : index
    %c0_131 = arith.constant 0 : index
    %c0_132 = arith.constant 0 : index
    %225 = vector.load %arg12[%c9_130, %c0_131, %c0_132] : memref<10x8x128xf32, #tpu.memory_space<vmem>>, vector<1x8x128xf32>
    %226 = vector.shape_cast %225 : vector<1x8x128xf32> to vector<8x128xf32>
    %227 = vector.broadcast %171 : vector<8x1xf32> to vector<8x128xf32>
    %228 = arith.mulf %227, %226 : vector<8x128xf32>
    %229 = arith.addf %224, %228 : vector<8x128xf32>
    %230 = tpu.reciprocal %180 : vector<8x1xf32> -> vector<8x1xf32>
    %231 = vector.broadcast %230 : vector<8x1xf32> to vector<8x128xf32>
    %232 = arith.mulf %229, %231 : vector<8x128xf32>
    %c0_133 = arith.constant 0 : index
    %c0_134 = arith.constant 0 : index
    %233 = vector.load %arg9[%c0_133, %c0_134] : memref<128x128xf32, #tpu.memory_space<vmem>>, vector<128x128xf32>
    %cst_135 = arith.constant dense<0.000000e+00> : vector<8x128xf32>
    %234 = tpu.matmul %232, %233, %cst_135 {dimension_numbers = #tpu.dot_dimension_numbers<[1], [0], [0], [1], [0, 0, 1, 1], [], []>} : vector<8x128xf32>, vector<128x128xf32>, vector<8x128xf32> -> vector<8x128xf32>
    %c0_136 = arith.constant 0 : index
    %c0_137 = arith.constant 0 : index
    %235 = vector.load %arg10[%c0_136, %c0_137] : memref<1x128xf32, #tpu.memory_space<vmem>>, vector<1x128xf32>
    %236 = vector.broadcast %235 : vector<1x128xf32> to vector<8x128xf32>
    %237 = arith.addf %234, %236 : vector<8x128xf32>
    %238 = math.tanh %237 : vector<8x128xf32>
    %239 = tpu.concatenate %6, %238 in 1 : vector<8x128xf32>, vector<8x128xf32> -> vector<8x256xf32>
    %c0_138 = arith.constant 0 : index
    %c0_139 = arith.constant 0 : index
    %240 = vector.load %arg11[%c0_138, %c0_139] : memref<8x256xf32, #tpu.memory_space<vmem>>, vector<8x256xf32>
    tpu.vector_store %arg11[%c0_138, %c0_139], %239 {strides = array<i32>} : memref<8x256xf32, #tpu.memory_space<vmem>>, vector<8x256xf32>,
    return
  }
  func.func @transform_0(%arg0: i32) -> (i32, i32) {
    %c0_i32 = arith.constant 0 : i32
    %c0_i32_0 = arith.constant 0 : i32
    return %arg0, %c0_i32 : i32, i32
  }
  func.func @transform_1(%arg0: i32) -> (i32, i32) {
    %c0_i32 = arith.constant 0 : i32
    %c0_i32_0 = arith.constant 0 : i32
    return %arg0, %c0_i32 : i32, i32
  }
  func.func @transform_2(%arg0: i32) -> (i32, i32) {
    %c0_i32 = arith.constant 0 : i32
    %c0_i32_0 = arith.constant 0 : i32
    %c0_i32_1 = arith.constant 0 : i32
    return %c0_i32, %c0_i32_0 : i32, i32
  }
  func.func @transform_3(%arg0: i32) -> (i32, i32) {
    %c0_i32 = arith.constant 0 : i32
    %c0_i32_0 = arith.constant 0 : i32
    %c0_i32_1 = arith.constant 0 : i32
    return %c0_i32, %c0_i32_0 : i32, i32
  }
  func.func @transform_4(%arg0: i32) -> (i32, i32, i32) {
    %c0_i32 = arith.constant 0 : i32
    %c0_i32_0 = arith.constant 0 : i32
    %c0_i32_1 = arith.constant 0 : i32
    %c0_i32_2 = arith.constant 0 : i32
    return %c0_i32, %c0_i32_0, %c0_i32_1 : i32, i32, i32
  }
  func.func @transform_5(%arg0: i32) -> (i32, i32) {
    %c0_i32 = arith.constant 0 : i32
    %c0_i32_0 = arith.constant 0 : i32
    %c0_i32_1 = arith.constant 0 : i32
    return %c0_i32, %c0_i32_0 : i32, i32
  }
  func.func @transform_6(%arg0: i32) -> (i32, i32) {
    %c0_i32 = arith.constant 0 : i32
    %c0_i32_0 = arith.constant 0 : i32
    %c0_i32_1 = arith.constant 0 : i32
    return %c0_i32, %c0_i32_0 : i32, i32
  }
  func.func @transform_7(%arg0: i32) -> (i32, i32) {
    %c0_i32 = arith.constant 0 : i32
    %c0_i32_0 = arith.constant 0 : i32
    %c0_i32_1 = arith.constant 0 : i32
    return %c0_i32, %c0_i32_0 : i32, i32
  }
  func.func @transform_8(%arg0: i32) -> (i32, i32) {
    %c0_i32 = arith.constant 0 : i32
    %c0_i32_0 = arith.constant 0 : i32
    %c0_i32_1 = arith.constant 0 : i32
    return %c0_i32, %c0_i32_0 : i32, i32
  }
  func.func @transform_9(%arg0: i32) -> (i32, i32) {
    %c0_i32 = arith.constant 0 : i32
    %c0_i32_0 = arith.constant 0 : i32
    %c0_i32_1 = arith.constant 0 : i32
    return %c0_i32, %c0_i32_0 : i32, i32
  }
  func.func @transform_10(%arg0: i32) -> (i32, i32) {
    %c0_i32 = arith.constant 0 : i32
    %c0_i32_0 = arith.constant 0 : i32
    return %arg0, %c0_i32 : i32, i32
  }
}

</mosaic_0001>

<llo_original>
// kernel: tpu_custom_call.1
$region0: #{tpu_custom_call.1}
  #allocation0 [shape = 'u32[]', space=smem, size = 0x4, offset = 0x4, fixed_abs, tag = 'smem constant byte address 0x4 - core index']
  #allocation1 [shape = 'u32[144,128]{1,0:T(1,128)}', space=vmem, size = 0x12000, scoped, tag = 'internal scratch']
  #allocation2 [shape = 'f32[10,8,128]{2,1,0:T(8,128)}', space=vmem, size = 0xa000, scoped, tag = 'scratch operand']
  %s0 = inlined_call_operand.hbm [shape: f32[8,32], index: 0, kind: input, shape index: {}]
  %s1 = inlined_call_operand.hbm [shape: f32[8,16], index: 1, kind: input, shape index: {}]
  %s2 = inlined_call_operand.hbm [shape: f32[32,1280], index: 2, kind: input, shape index: {}]
  %s3 = inlined_call_operand.hbm [shape: f32[1,1280], index: 3, kind: input, shape index: {}]
  %s4 = inlined_call_operand.hbm [shape: f32[10,128,128], index: 4, kind: input, shape index: {}]
  %s5 = inlined_call_operand.vmem [shape: f32[10,128], index: 5, kind: input, shape index: {}]
  %s6 = inlined_call_operand.hbm [shape: f32[16,128], index: 6, kind: input, shape index: {}]
  %s7 = inlined_call_operand.vmem [shape: f32[1,128], index: 7, kind: input, shape index: {}]
  %s8 = inlined_call_operand.hbm [shape: f32[128,128], index: 8, kind: input, shape index: {}]
  %s9 = inlined_call_operand.vmem [shape: f32[1,128], index: 9, kind: input, shape index: {}]
  %s10 = inlined_call_operand.hbm [shape: f32[8,256], index: 10, kind: output, shape index: {}]
  %s11 = sld [smem:[#allocation0]]
  $region78: #{tpu_custom_call.1} parent=0
    _
  %s13 = ssub.s32 1, %s11
  %s14 = scalar_select 0, %s13, %s11
  $region1: #{tpu_custom_call.1} parent=0
    #allocation3 [shape = 'u8[4096]{0}', space=vmem, size = 0x1000, scoped, tag = 'input window, operand 0, single buffered']
    #allocation4 [shape = 's32[1]{0}', space=sflag, size = 0x4, scoped, tag = 'scoped memory for tpu_custom_call.1']
    #allocation5 [shape = 's32[1]{0}', space=sflag, size = 0x4, scoped, tag = 'scoped memory for tpu_custom_call.1']
    #allocation6 [shape = 'u8[4096]{0}', space=vmem, size = 0x1000, scoped, tag = 'input window, operand 1, single buffered']
    #allocation7 [shape = 's32[1]{0}', space=sflag, size = 0x4, scoped, tag = 'scoped memory for tpu_custom_call.1']
    #allocation8 [shape = 'u8[163840]{0}', space=vmem, size = 0x28000, scoped, tag = 'input window, operand 2, single buffered']
    #allocation9 [shape = 'u8[5120]{0}', space=vmem, size = 0x1400, scoped, tag = 'input window, operand 3, single buffered']
    #allocation10 [shape = 's32[1]{0}', space=sflag, size = 0x4, scoped, tag = 'scoped memory for tpu_custom_call.1']
    #allocation11 [shape = 'u8[655360]{0}', space=vmem, size = 0xa0000, scoped, tag = 'input window, operand 4, single buffered']
    #allocation12 [shape = 'u8[8192]{0}', space=vmem, size = 0x2000, scoped, tag = 'input window, operand 6, single buffered']
    #allocation13 [shape = 's32[1]{0}', space=sflag, size = 0x4, scoped, tag = 'scoped memory for tpu_custom_call.1']
    #allocation14 [shape = 'u8[65536]{0}', space=vmem, size = 0x10000, scoped, tag = 'input window, operand 8, single buffered']
    #allocation15 [shape = 'u8[8192]{0}', space=vmem, size = 0x2000, scoped, tag = 'output window, operand 0, single buffered']
    %15 = vsyncpa [#allocation4], 0
    %16 = vsyncpa [#allocation7], 0
    %17 = vsyncpa [#allocation10], 0
    %18 = vsyncpa [#allocation13], 0
    %19 = vsyncpa [#allocation5], 0
    // Predicated region
    $region2: #{tpu_custom_call.1} parent=1 // pred_check
      _
    $region3: #{tpu_custom_call.1} parent=1 // pred_check_branch
      %21 = sbr.rel (0) target = $region5
    $region4: #{tpu_custom_call.1} parent=1 // pred_region
      %s23 = ssub.s32 128, 128
      %24 = vsyncadd [#allocation4], %s23
      %s26 = sshll.u32 [#allocation3], 4
      %s27 = int_to_ptr.vmem [resolvable:$true] %s26
      %29 = dma.hbm_to_vmem [thread:$0]  %s0, 128, %s27, [#allocation4]
    $region5: #{tpu_custom_call.1} parent=1 // pred_fallthru
      _
    // Predicated region
    $region6: #{tpu_custom_call.1} parent=1 // pred_check
      _
    $region7: #{tpu_custom_call.1} parent=1 // pred_check_branch
      %31 = sbr.rel (0) target = $region9
    $region8: #{tpu_custom_call.1} parent=1 // pred_region
      %s33 = ssub.s32 128, 128
      %34 = vsyncadd [#allocation7], %s33
      %s36 = sshll.u32 [#allocation6], 4
      %s37 = int_to_ptr.vmem [resolvable:$true] %s36
      %39 = dma.hbm_to_vmem [thread:$0]  %s1, 128, %s37, [#allocation7]
    $region9: #{tpu_custom_call.1} parent=1 // pred_fallthru
      _
    // Predicated region
    $region10: #{tpu_custom_call.1} parent=1 // pred_check
      _
    $region11: #{tpu_custom_call.1} parent=1 // pred_check_branch
      %41 = sbr.rel (0) target = $region13
    $region12: #{tpu_custom_call.1} parent=1 // pred_region
      %s43 = ssub.s32 5120, 5120
      %44 = vsyncadd [#allocation7], %s43
      %s45 = sshll.u32 [#allocation8], 4
      %s46 = int_to_ptr.vmem [resolvable:$true] %s45
      %51 = dma.hbm_to_vmem [thread:$0]  %s2, 5120, %s46, [#allocation7], 1280, 1280, 80
    $region13: #{tpu_custom_call.1} parent=1 // pred_fallthru
      _
    // Predicated region
    $region14: #{tpu_custom_call.1} parent=1 // pred_check
      _
    $region15: #{tpu_custom_call.1} parent=1 // pred_check_branch
      %53 = sbr.rel (0) target = $region17
    $region16: #{tpu_custom_call.1} parent=1 // pred_region
      %s55 = ssub.s32 160, 160
      %56 = vsyncadd [#allocation10], %s55
      %s58 = sshll.u32 [#allocation9], 4
      %s59 = int_to_ptr.vmem [resolvable:$true] %s58
      %61 = dma.hbm_to_vmem [thread:$0]  %s3, 160, %s59, [#allocation10]
    $region17: #{tpu_custom_call.1} parent=1 // pred_fallthru
      _
    // Predicated region
    $region18: #{tpu_custom_call.1} parent=1 // pred_check
      _
    $region19: #{tpu_custom_call.1} parent=1 // pred_check_branch
      %63 = sbr.rel (0) target = $region21
    $region20: #{tpu_custom_call.1} parent=1 // pred_region
      %s65 = ssub.s32 20480, 20480
      %66 = vsyncadd [#allocation10], %s65
      %s67 = sshll.u32 [#allocation11], 4
      %s68 = int_to_ptr.vmem [resolvable:$true] %s67
      %73 = dma.hbm_to_vmem [thread:$0]  %s4, 20480, %s68, [#allocation10], 128, 128, 8
    $region21: #{tpu_custom_call.1} parent=1 // pred_fallthru
      _
    // Predicated region
    $region22: #{tpu_custom_call.1} parent=1 // pred_check
      _
    $region23: #{tpu_custom_call.1} parent=1 // pred_check_branch
      %75 = sbr.rel (0) target = $region25
    $region24: #{tpu_custom_call.1} parent=1 // pred_region
      _
    $region25: #{tpu_custom_call.1} parent=1 // pred_fallthru
      _
    // Predicated region
    $region26: #{tpu_custom_call.1} parent=1 // pred_check
      _
    $region27: #{tpu_custom_call.1} parent=1 // pred_check_branch
      %77 = sbr.rel (0) target = $region29
    $region28: #{tpu_custom_call.1} parent=1 // pred_region
      %s79 = ssub.s32 256, 256
      %80 = vsyncadd [#allocation13], %s79
      %s81 = sshll.u32 [#allocation12], 4
      %s82 = int_to_ptr.vmem [resolvable:$true] %s81
      %87 = dma.hbm_to_vmem [thread:$0]  %s6, 256, %s82, [#allocation13], 128, 128, 8
    $region29: #{tpu_custom_call.1} parent=1 // pred_fallthru
      _
    // Predicated region
    $region30: #{tpu_custom_call.1} parent=1 // pred_check
      _
    $region31: #{tpu_custom_call.1} parent=1 // pred_check_branch
      %89 = sbr.rel (0) target = $region33
    $region32: #{tpu_custom_call.1} parent=1 // pred_region
      _
    $region33: #{tpu_custom_call.1} parent=1 // pred_fallthru
      _
    // Predicated region
    $region34: #{tpu_custom_call.1} parent=1 // pred_check
      _
    $region35: #{tpu_custom_call.1} parent=1 // pred_check_branch
      %91 = sbr.rel (0) target = $region37
    $region36: #{tpu_custom_call.1} parent=1 // pred_region
      %s93 = ssub.s32 2048, 2048
      %94 = vsyncadd [#allocation13], %s93
      %s95 = sshll.u32 [#allocation14], 4
      %s96 = int_to_ptr.vmem [resolvable:$true] %s95
      %101 = dma.hbm_to_vmem [thread:$0]  %s8, 2048, %s96, [#allocation13], 128, 128, 8
    $region37: #{tpu_custom_call.1} parent=1 // pred_fallthru
      _
    // Predicated region
    $region38: #{tpu_custom_call.1} parent=1 // pred_check
      _
    $region39: #{tpu_custom_call.1} parent=1 // pred_check_branch
      %103 = sbr.rel (0) target = $region41
    $region40: #{tpu_custom_call.1} parent=1 // pred_region
      _
    $region41: #{tpu_custom_call.1} parent=1 // pred_fallthru
      _
    // Predicated region
    $region42: #{tpu_custom_call.1} parent=1 // pred_check
      _
    $region43: #{tpu_custom_call.1} parent=1 // pred_check_branch
      %105 = sbr.rel (0) target = $region45
    $region44: #{tpu_custom_call.1} parent=1 // pred_region
      %106 = dma.done [#allocation4], 128
    $region45: #{tpu_custom_call.1} parent=1 // pred_fallthru
      _
    // Predicated region
    $region46: #{tpu_custom_call.1} parent=1 // pred_check
      _
    $region47: #{tpu_custom_call.1} parent=1 // pred_check_branch
      %108 = sbr.rel (0) target = $region49
    $region48: #{tpu_custom_call.1} parent=1 // pred_region
      %109 = dma.done [#allocation7], 128
    $region49: #{tpu_custom_call.1} parent=1 // pred_fallthru
      _
    // Predicated region
    $region50: #{tpu_custom_call.1} parent=1 // pred_check
      _
    $region51: #{tpu_custom_call.1} parent=1 // pred_check_branch
      %111 = sbr.rel (0) target = $region53
    $region52: #{tpu_custom_call.1} parent=1 // pred_region
      %112 = dma.done [#allocation7], 5120
    $region53: #{tpu_custom_call.1} parent=1 // pred_fallthru
      _
    // Predicated region
    $region54: #{tpu_custom_call.1} parent=1 // pred_check
      _
    $region55: #{tpu_custom_call.1} parent=1 // pred_check_branch
      %114 = sbr.rel (0) target = $region57
    $region56: #{tpu_custom_call.1} parent=1 // pred_region
      %115 = dma.done [#allocation10], 160
    $region57: #{tpu_custom_call.1} parent=1 // pred_fallthru
      _
    // Predicated region
    $region58: #{tpu_custom_call.1} parent=1 // pred_check
      _
    $region59: #{tpu_custom_call.1} parent=1 // pred_check_branch
      %117 = sbr.rel (0) target = $region61
    $region60: #{tpu_custom_call.1} parent=1 // pred_region
      %118 = dma.done [#allocation10], 20480
    $region61: #{tpu_custom_call.1} parent=1 // pred_fallthru
      _
    // Predicated region
    $region62: #{tpu_custom_call.1} parent=1 // pred_check
      _
    $region63: #{tpu_custom_call.1} parent=1 // pred_check_branch
      %120 = sbr.rel (0) target = $region65
    $region64: #{tpu_custom_call.1} parent=1 // pred_region
      %121 = dma.done [#allocation13], 256
    $region65: #{tpu_custom_call.1} parent=1 // pred_fallthru
      _
    // Predicated region
    $region66: #{tpu_custom_call.1} parent=1 // pred_check
      _
    $region67: #{tpu_custom_call.1} parent=1 // pred_check_branch
      %123 = sbr.rel (0) target = $region69
    $region68: #{tpu_custom_call.1} parent=1 // pred_region
      %124 = dma.done [#allocation13], 2048
    $region69: #{tpu_custom_call.1} parent=1 // pred_fallthru
      _
    %v125 = vld [vmem:[#allocation3] sm:$0xff]
    %v126 = vld [vmem:[#allocation6] sm:$0xff]
    %v127 = vld [vmem:[#allocation12] sm:$0xff]
    %v128 = vld [vmem:[#allocation12 + $0x8] sm:$0xff]
    %v129 = vld [vmem:[%s7] sm:$0x1]
    %v131 = vlaneseq
    %v132 = vshrl.u32 %v131, 7
    %v133 = vsub.s32 0, %v132
    %v134 = vrot.slane %v129, %v133
    %vm136 = vcmask 130048
    %v138 = vsel %vm136, %v126, 0
    %140 = vmatprep.subr.mxu0 0.0
    %141 = vmatpush1.msra.mxu0 %v127
    %142 = vmatprep.subr.mxu0 0.0
    %143 = vmatpush1.msra.mxu0 %v128
    %144 = vmatprep.subr.mxu0 0.0
    %145 = vmatpush1.msra.mxu0 0.0
    %146 = vmatprep.subr.mxu0 0.0
    %147 = vmatpush1.msra.mxu0 0.0
    %148 = vmatprep.subr.mxu0 0.0
    %149 = vmatpush1.msra.mxu0 0.0
    %150 = vmatprep.subr.mxu0 0.0
    %151 = vmatpush1.msra.mxu0 0.0
    %152 = vmatprep.subr.mxu0 0.0
    %153 = vmatpush1.msra.mxu0 0.0
    %154 = vmatprep.subr.mxu0 0.0
    %155 = vmatpush1.msra.mxu0 0.0
    %156 = vmatprep.subr.mxu0 0.0
    %157 = vmatpush1.msra.mxu0 0.0
    %158 = vmatprep.subr.mxu0 0.0
    %159 = vmatpush1.msra.mxu0 0.0
    %160 = vmatprep.subr.mxu0 0.0
    %161 = vmatpush1.msra.mxu0 0.0
    %162 = vmatprep.subr.mxu0 0.0
    %163 = vmatpush1.msra.mxu0 0.0
    %164 = vmatprep.subr.mxu0 0.0
    %165 = vmatpush1.msra.mxu0 0.0
    %166 = vmatprep.subr.mxu0 0.0
    %167 = vmatpush1.msra.mxu0 0.0
    %168 = vmatprep.subr.mxu0 0.0
    %169 = vmatpush1.msra.mxu0 0.0
    %170 = vmatprep.subr.mxu0 0.0
    %171 = vmatpush1.msra.mxu0 0.0
    %172 = vmatprep.subr.mxu0 0.0
    %173 = vmatpush1.msra.mxu0 0.0
    %174 = vmatprep.subr.mxu0 0.0
    %175 = vmatpush1.msra.mxu0 0.0
    %176 = vmatprep.subr.mxu0 0.0
    %177 = vmatpush1.msra.mxu0 0.0
    %178 = vmatprep.subr.mxu0 0.0
    %179 = vmatpush1.msra.mxu0 0.0
    %180 = vmatprep.subr.mxu0 0.0
    %181 = vmatpush1.msra.mxu0 0.0
    %182 = vmatprep.subr.mxu0 0.0
    %183 = vmatpush1.msra.mxu0 0.0
    %184 = vmatprep.subr.mxu0 0.0
    %185 = vmatpush1.msra.mxu0 0.0
    %186 = vmatprep.subr.mxu0 0.0
    %187 = vmatpush1.msra.mxu0 0.0
    %188 = vmatprep.subr.mxu0 0.0
    %189 = vmatpush1.msra.mxu0 0.0
    %190 = vmatprep.subr.mxu0 0.0
    %191 = vmatpush1.msra.mxu0 0.0
    %192 = vmatprep.subr.mxu0 0.0
    %193 = vmatpush1.msra.mxu0 0.0
    %194 = vmatprep.subr.mxu0 0.0
    %195 = vmatpush1.msra.mxu0 0.0
    %196 = vmatprep.subr.mxu0 0.0
    %197 = vmatpush1.msra.mxu0 0.0
    %198 = vmatprep.subr.mxu0 0.0
    %199 = vmatpush1.msra.mxu0 0.0
    %200 = vmatprep.subr.mxu0 0.0
    %201 = vmatpush1.msra.mxu0 0.0
    %202 = vmatprep.subr.mxu0 0.0
    %203 = vmatpush1.msra.mxu0 0.0
    %204 = vmatprep.mubr.f32.mxu0 0.0
    %205 = vmatmul.mubr.f32.gmra.mrb[0].mxu0 %v138
    %v206 = vpop.f32.mrb[0].mxu0
    %v207 = vadd.f32 %v134, %v206
    %v208 = vpop.f32.mrb[0].mxu0
    %209 = vdwg.mxu0
    %v210 = vld [vmem:[#allocation8] sm:$0xff]
    %v211 = vld [vmem:[#allocation8 + $0x8] sm:$0xff]
    %v212 = vld [vmem:[#allocation8 + $0x10] sm:$0xff]
    %v213 = vld [vmem:[#allocation8 + $0x18] sm:$0xff]
    %v214 = vld [vmem:[#allocation8 + $0x20] sm:$0xff]
    %v215 = vld [vmem:[#allocation8 + $0x28] sm:$0xff]
    %v216 = vld [vmem:[#allocation8 + $0x30] sm:$0xff]
    %v217 = vld [vmem:[#allocation8 + $0x38] sm:$0xff]
    %v218 = vld [vmem:[#allocation8 + $0x40] sm:$0xff]
    %v219 = vld [vmem:[#allocation8 + $0x48] sm:$0xff]
    %v220 = vld [vmem:[#allocation8 + $0x50] sm:$0xff]
    %v221 = vld [vmem:[#allocation8 + $0x58] sm:$0xff]
    %v222 = vld [vmem:[#allocation8 + $0x60] sm:$0xff]
    %v223 = vld [vmem:[#allocation8 + $0x68] sm:$0xff]
    %v224 = vld [vmem:[#allocation8 + $0x70] sm:$0xff]
    %v225 = vld [vmem:[#allocation8 + $0x78] sm:$0xff]
    %v226 = vld [vmem:[#allocation8 + $0x80] sm:$0xff]
    %v227 = vld [vmem:[#allocation8 + $0x88] sm:$0xff]
    %v228 = vld [vmem:[#allocation8 + $0x90] sm:$0xff]
    %v229 = vld [vmem:[#allocation8 + $0x98] sm:$0xff]
    %v230 = vld [vmem:[#allocation8 + $0xa0] sm:$0xff]
    %v231 = vld [vmem:[#allocation8 + $0xa8] sm:$0xff]
    %v232 = vld [vmem:[#allocation8 + $0xb0] sm:$0xff]
    %v233 = vld [vmem:[#allocation8 + $0xb8] sm:$0xff]
    %v234 = vld [vmem:[#allocation8 + $0xc0] sm:$0xff]
    %v235 = vld [vmem:[#allocation8 + $0xc8] sm:$0xff]
    %v236 = vld [vmem:[#allocation8 + $0xd0] sm:$0xff]
    %v237 = vld [vmem:[#allocation8 + $0xd8] sm:$0xff]
    %v238 = vld [vmem:[#allocation8 + $0xe0] sm:$0xff]
    %v239 = vld [vmem:[#allocation8 + $0xe8] sm:$0xff]
    %v240 = vld [vmem:[#allocation8 + $0xf0] sm:$0xff]
    %v241 = vld [vmem:[#allocation8 + $0xf8] sm:$0xff]
    %v242 = vld [vmem:[#allocation8 + $0x100] sm:$0xff]
    %v243 = vld [vmem:[#allocation8 + $0x108] sm:$0xff]
    %v244 = vld [vmem:[#allocation8 + $0x110] sm:$0xff]
    %v245 = vld [vmem:[#allocation8 + $0x118] sm:$0xff]
    %v246 = vld [vmem:[#allocation8 + $0x120] sm:$0xff]
    %v247 = vld [vmem:[#allocation8 + $0x128] sm:$0xff]
    %v248 = vld [vmem:[#allocation8 + $0x130] sm:$0xff]
    %v249 = vld [vmem:[#allocation8 + $0x138] sm:$0xff]
    %v250 = vld [vmem:[#allocation9] sm:$0xff]
    %v251 = vld [vmem:[#allocation9 + $0x8] sm:$0x3]
    %v254 = vlaneseq
    %v255 = vshrl.u32 %v254, 7
    %v256 = vsub.s32 0, %v255
    %v257 = vrot.slane %v250, %v256
    %v258 = vlaneseq
    %v259 = vshrl.u32 %v258, 7
    %v260 = vsub.s32 1, %v259
    %v261 = vrot.slane %v250, %v260
    %v262 = vlaneseq
    %v263 = vshrl.u32 %v262, 7
    %v264 = vsub.s32 2, %v263
    %v265 = vrot.slane %v250, %v264
    %v266 = vlaneseq
    %v267 = vshrl.u32 %v266, 7
    %v268 = vsub.s32 3, %v267
    %v269 = vrot.slane %v250, %v268
    %v270 = vlaneseq
    %v271 = vshrl.u32 %v270, 7
    %v272 = vsub.s32 4, %v271
    %v273 = vrot.slane %v250, %v272
    %v274 = vlaneseq
    %v275 = vshrl.u32 %v274, 7
    %v276 = vsub.s32 5, %v275
    %v277 = vrot.slane %v250, %v276
    %v278 = vlaneseq
    %v279 = vshrl.u32 %v278, 7
    %v280 = vsub.s32 6, %v279
    %v281 = vrot.slane %v250, %v280
    %v282 = vlaneseq
    %v283 = vshrl.u32 %v282, 7
    %v284 = vsub.s32 7, %v283
    %v285 = vrot.slane %v250, %v284
    %v286 = vlaneseq
    %v287 = vshrl.u32 %v286, 7
    %v288 = vsub.s32 0, %v287
    %v289 = vrot.slane %v251, %v288
    %v290 = vlaneseq
    %v291 = vshrl.u32 %v290, 7
    %v292 = vsub.s32 1, %v291
    %v293 = vrot.slane %v251, %v292
    %vm304 = vcmask 261120
    %v306 = vsel %vm304, %v125, 0
    %308 = vmatprep.subr.mxu0 %v211
    %309 = vmatpush1.msra.mxu0 %v210
    %310 = vmatprep.subr.mxu0 %v221
    %311 = vmatpush1.msra.mxu0 %v220
    %312 = vmatprep.subr.mxu0 %v231
    %313 = vmatpush1.msra.mxu0 %v230
    %314 = vmatprep.subr.mxu0 %v241
    %315 = vmatpush1.msra.mxu0 %v240
    %316 = vmatprep.subr.mxu0 0.0
    %317 = vmatpush1.msra.mxu0 0.0
    %318 = vmatprep.subr.mxu0 0.0
    %319 = vmatpush1.msra.mxu0 0.0
    %320 = vmatprep.subr.mxu0 0.0
    %321 = vmatpush1.msra.mxu0 0.0
    %322 = vmatprep.subr.mxu0 0.0
    %323 = vmatpush1.msra.mxu0 0.0
    %324 = vmatprep.subr.mxu0 0.0
    %325 = vmatpush1.msra.mxu0 0.0
    %326 = vmatprep.subr.mxu0 0.0
    %327 = vmatpush1.msra.mxu0 0.0
    %328 = vmatprep.subr.mxu0 0.0
    %329 = vmatpush1.msra.mxu0 0.0
    %330 = vmatprep.subr.mxu0 0.0
    %331 = vmatpush1.msra.mxu0 0.0
    %332 = vmatprep.subr.mxu0 0.0
    %333 = vmatpush1.msra.mxu0 0.0
    %334 = vmatprep.subr.mxu0 0.0
    %335 = vmatpush1.msra.mxu0 0.0
    %336 = vmatprep.subr.mxu0 0.0
    %337 = vmatpush1.msra.mxu0 0.0
    %338 = vmatprep.subr.mxu0 0.0
    %339 = vmatpush1.msra.mxu0 0.0
    %340 = vmatprep.subr.mxu0 0.0
    %341 = vmatpush1.msra.mxu0 0.0
    %342 = vmatprep.subr.mxu0 0.0
    %343 = vmatpush1.msra.mxu0 0.0
    %344 = vmatprep.subr.mxu0 0.0
    %345 = vmatpush1.msra.mxu0 0.0
    %346 = vmatprep.subr.mxu0 0.0
    %347 = vmatpush1.msra.mxu0 0.0
    %348 = vmatprep.subr.mxu0 0.0
    %349 = vmatpush1.msra.mxu0 0.0
    %350 = vmatprep.subr.mxu0 0.0
    %351 = vmatpush1.msra.mxu0 0.0
    %352 = vmatprep.subr.mxu0 0.0
    %353 = vmatpush1.msra.mxu0 0.0
    %354 = vmatprep.subr.mxu0 0.0
    %355 = vmatpush1.msra.mxu0 0.0
    %356 = vmatprep.subr.mxu0 0.0
    %357 = vmatpush1.msra.mxu0 0.0
    %358 = vmatprep.subr.mxu0 0.0
    %359 = vmatpush1.msra.mxu0 0.0
    %360 = vmatprep.subr.mxu0 0.0
    %361 = vmatpush1.msra.mxu0 0.0
    %362 = vmatprep.subr.mxu0 0.0
    %363 = vmatpush1.msra.mxu0 0.0
    %364 = vmatprep.subr.mxu0 0.0
    %365 = vmatpush1.msra.mxu0 0.0
    %366 = vmatprep.subr.mxu0 0.0
    %367 = vmatpush1.msra.mxu0 0.0
    %368 = vmatprep.subr.mxu0 0.0
    %369 = vmatpush1.msra.mxu0 0.0
    %370 = vmatprep.subr.mxu0 0.0
    %371 = vmatpush1.msra.mxu0 0.0
    %372 = vmatprep.mubr.f32.mxu0 0.0
    %373 = vmatmul.mubr.f32.gmra.mrb[0].mxu0 %v306
    %v374 = vpop.f32.mrb[0].mxu0
    %v375 = vadd.f32 %v257, %v374
    %v376 = vpop.f32.mrb[0].mxu0
    %v377 = vadd.f32 %v261, %v376
    %378 = vdwg.mxu0
    %379 = vmatprep.subr.mxu0 %v213
    %380 = vmatpush1.msra.mxu0 %v212
    %381 = vmatprep.subr.mxu0 %v223
    %382 = vmatpush1.msra.mxu0 %v222
    %383 = vmatprep.subr.mxu0 %v233
    %384 = vmatpush1.msra.mxu0 %v232
    %385 = vmatprep.subr.mxu0 %v243
    %386 = vmatpush1.msra.mxu0 %v242
    %387 = vmatprep.subr.mxu0 0.0
    %388 = vmatpush1.msra.mxu0 0.0
    %389 = vmatprep.subr.mxu0 0.0
    %390 = vmatpush1.msra.mxu0 0.0
    %391 = vmatprep.subr.mxu0 0.0
    %392 = vmatpush1.msra.mxu0 0.0
    %393 = vmatprep.subr.mxu0 0.0
    %394 = vmatpush1.msra.mxu0 0.0
    %395 = vmatprep.subr.mxu0 0.0
    %396 = vmatpush1.msra.mxu0 0.0
    %397 = vmatprep.subr.mxu0 0.0
    %398 = vmatpush1.msra.mxu0 0.0
    %399 = vmatprep.subr.mxu0 0.0
    %400 = vmatpush1.msra.mxu0 0.0
    %401 = vmatprep.subr.mxu0 0.0
    %402 = vmatpush1.msra.mxu0 0.0
    %403 = vmatprep.subr.mxu0 0.0
    %404 = vmatpush1.msra.mxu0 0.0
    %405 = vmatprep.subr.mxu0 0.0
    %406 = vmatpush1.msra.mxu0 0.0
    %407 = vmatprep.subr.mxu0 0.0
    %408 = vmatpush1.msra.mxu0 0.0
    %409 = vmatprep.subr.mxu0 0.0
    %410 = vmatpush1.msra.mxu0 0.0
    %411 = vmatprep.subr.mxu0 0.0
    %412 = vmatpush1.msra.mxu0 0.0
    %413 = vmatprep.subr.mxu0 0.0
    %414 = vmatpush1.msra.mxu0 0.0
    %415 = vmatprep.subr.mxu0 0.0
    %416 = vmatpush1.msra.mxu0 0.0
    %417 = vmatprep.subr.mxu0 0.0
    %418 = vmatpush1.msra.mxu0 0.0
    %419 = vmatprep.subr.mxu0 0.0
    %420 = vmatpush1.msra.mxu0 0.0
    %421 = vmatprep.subr.mxu0 0.0
    %422 = vmatpush1.msra.mxu0 0.0
    %423 = vmatprep.subr.mxu0 0.0
    %424 = vmatpush1.msra.mxu0 0.0
    %425 = vmatprep.subr.mxu0 0.0
    %426 = vmatpush1.msra.mxu0 0.0
    %427 = vmatprep.subr.mxu0 0.0
    %428 = vmatpush1.msra.mxu0 0.0
    %429 = vmatprep.subr.mxu0 0.0
    %430 = vmatpush1.msra.mxu0 0.0
    %431 = vmatprep.subr.mxu0 0.0
    %432 = vmatpush1.msra.mxu0 0.0
    %433 = vmatprep.subr.mxu0 0.0
    %434 = vmatpush1.msra.mxu0 0.0
    %435 = vmatprep.subr.mxu0 0.0
    %436 = vmatpush1.msra.mxu0 0.0
    %437 = vmatprep.subr.mxu0 0.0
    %438 = vmatpush1.msra.mxu0 0.0
    %439 = vmatprep.subr.mxu0 0.0
    %440 = vmatpush1.msra.mxu0 0.0
    %441 = vmatprep.subr.mxu0 0.0
    %442 = vmatpush1.msra.mxu0 0.0
    %443 = vmatprep.mubr.f32.mxu0 0.0
    %444 = vmatmul.mubr.f32.gmra.mrb[0].mxu0 %v306
    %v445 = vpop.f32.mrb[0].mxu0
    %v446 = vadd.f32 %v265, %v445
    %v447 = vpop.f32.mrb[0].mxu0
    %v448 = vadd.f32 %v269, %v447
    %449 = vdwg.mxu0
    %450 = vmatprep.subr.mxu0 %v215
    %451 = vmatpush1.msra.mxu0 %v214
    %452 = vmatprep.subr.mxu0 %v225
    %453 = vmatpush1.msra.mxu0 %v224
    %454 = vmatprep.subr.mxu0 %v235
    %455 = vmatpush1.msra.mxu0 %v234
    %456 = vmatprep.subr.mxu0 %v245
    %457 = vmatpush1.msra.mxu0 %v244
    %458 = vmatprep.subr.mxu0 0.0
    %459 = vmatpush1.msra.mxu0 0.0
    %460 = vmatprep.subr.mxu0 0.0
    %461 = vmatpush1.msra.mxu0 0.0
    %462 = vmatprep.subr.mxu0 0.0
    %463 = vmatpush1.msra.mxu0 0.0
    %464 = vmatprep.subr.mxu0 0.0
    %465 = vmatpush1.msra.mxu0 0.0
    %466 = vmatprep.subr.mxu0 0.0
    %467 = vmatpush1.msra.mxu0 0.0
    %468 = vmatprep.subr.mxu0 0.0
    %469 = vmatpush1.msra.mxu0 0.0
    %470 = vmatprep.subr.mxu0 0.0
    %471 = vmatpush1.msra.mxu0 0.0
    %472 = vmatprep.subr.mxu0 0.0
    %473 = vmatpush1.msra.mxu0 0.0
    %474 = vmatprep.subr.mxu0 0.0
    %475 = vmatpush1.msra.mxu0 0.0
    %476 = vmatprep.subr.mxu0 0.0
    %477 = vmatpush1.msra.mxu0 0.0
    %478 = vmatprep.subr.mxu0 0.0
    %479 = vmatpush1.msra.mxu0 0.0
    %480 = vmatprep.subr.mxu0 0.0
    %481 = vmatpush1.msra.mxu0 0.0
    %482 = vmatprep.subr.mxu0 0.0
    %483 = vmatpush1.msra.mxu0 0.0
    %484 = vmatprep.subr.mxu0 0.0
    %485 = vmatpush1.msra.mxu0 0.0
    %486 = vmatprep.subr.mxu0 0.0
    %487 = vmatpush1.msra.mxu0 0.0
    %488 = vmatprep.subr.mxu0 0.0
    %489 = vmatpush1.msra.mxu0 0.0
    %490 = vmatprep.subr.mxu0 0.0
    %491 = vmatpush1.msra.mxu0 0.0
    %492 = vmatprep.subr.mxu0 0.0
    %493 = vmatpush1.msra.mxu0 0.0
    %494 = vmatprep.subr.mxu0 0.0
    %495 = vmatpush1.msra.mxu0 0.0
    %496 = vmatprep.subr.mxu0 0.0
    %497 = vmatpush1.msra.mxu0 0.0
    %498 = vmatprep.subr.mxu0 0.0
    %499 = vmatpush1.msra.mxu0 0.0
    %500 = vmatprep.subr.mxu0 0.0
    %501 = vmatpush1.msra.mxu0 0.0
    %502 = vmatprep.subr.mxu0 0.0
    %503 = vmatpush1.msra.mxu0 0.0
    %504 = vmatprep.subr.mxu0 0.0
    %505 = vmatpush1.msra.mxu0 0.0
    %506 = vmatprep.subr.mxu0 0.0
    %507 = vmatpush1.msra.mxu0 0.0
    %508 = vmatprep.subr.mxu0 0.0
    %509 = vmatpush1.msra.mxu0 0.0
    %510 = vmatprep.subr.mxu0 0.0
    %511 = vmatpush1.msra.mxu0 0.0
    %512 = vmatprep.subr.mxu0 0.0
    %513 = vmatpush1.msra.mxu0 0.0
    %514 = vmatprep.mubr.f32.mxu0 0.0
    %515 = vmatmul.mubr.f32.gmra.mrb[0].mxu0 %v306
    %v516 = vpop.f32.mrb[0].mxu0
    %v517 = vadd.f32 %v273, %v516
    %v518 = vpop.f32.mrb[0].mxu0
    %v519 = vadd.f32 %v277, %v518
    %520 = vdwg.mxu0
    %521 = vmatprep.subr.mxu0 %v217
    %522 = vmatpush1.msra.mxu0 %v216
    %523 = vmatprep.subr.mxu0 %v227
    %524 = vmatpush1.msra.mxu0 %v226
    %525 = vmatprep.subr.mxu0 %v237
    %526 = vmatpush1.msra.mxu0 %v236
    %527 = vmatprep.subr.mxu0 %v247
    %528 = vmatpush1.msra.mxu0 %v246
    %529 = vmatprep.subr.mxu0 0.0
    %530 = vmatpush1.msra.mxu0 0.0
    %531 = vmatprep.subr.mxu0 0.0
    %532 = vmatpush1.msra.mxu0 0.0
    %533 = vmatprep.subr.mxu0 0.0
    %534 = vmatpush1.msra.mxu0 0.0
    %535 = vmatprep.subr.mxu0 0.0
    %536 = vmatpush1.msra.mxu0 0.0
    %537 = vmatprep.subr.mxu0 0.0
    %538 = vmatpush1.msra.mxu0 0.0
    %539 = vmatprep.subr.mxu0 0.0
    %540 = vmatpush1.msra.mxu0 0.0
    %541 = vmatprep.subr.mxu0 0.0
    %542 = vmatpush1.msra.mxu0 0.0
    %543 = vmatprep.subr.mxu0 0.0
    %544 = vmatpush1.msra.mxu0 0.0
    %545 = vmatprep.subr.mxu0 0.0
    %546 = vmatpush1.msra.mxu0 0.0
    %547 = vmatprep.subr.mxu0 0.0
    %548 = vmatpush1.msra.mxu0 0.0
    %549 = vmatprep.subr.mxu0 0.0
    %550 = vmatpush1.msra.mxu0 0.0
    %551 = vmatprep.subr.mxu0 0.0
    %552 = vmatpush1.msra.mxu0 0.0
    %553 = vmatprep.subr.mxu0 0.0
    %554 = vmatpush1.msra.mxu0 0.0
    %555 = vmatprep.subr.mxu0 0.0
    %556 = vmatpush1.msra.mxu0 0.0
    %557 = vmatprep.subr.mxu0 0.0
    %558 = vmatpush1.msra.mxu0 0.0
    %559 = vmatprep.subr.mxu0 0.0
    %560 = vmatpush1.msra.mxu0 0.0
    %561 = vmatprep.subr.mxu0 0.0
    %562 = vmatpush1.msra.mxu0 0.0
    %563 = vmatprep.subr.mxu0 0.0
    %564 = vmatpush1.msra.mxu0 0.0
    %565 = vmatprep.subr.mxu0 0.0
    %566 = vmatpush1.msra.mxu0 0.0
    %567 = vmatprep.subr.mxu0 0.0
    %568 = vmatpush1.msra.mxu0 0.0
    %569 = vmatprep.subr.mxu0 0.0
    %570 = vmatpush1.msra.mxu0 0.0
    %571 = vmatprep.subr.mxu0 0.0
    %572 = vmatpush1.msra.mxu0 0.0
    %573 = vmatprep.subr.mxu0 0.0
    %574 = vmatpush1.msra.mxu0 0.0
    %575 = vmatprep.subr.mxu0 0.0
    %576 = vmatpush1.msra.mxu0 0.0
    %577 = vmatprep.subr.mxu0 0.0
    %578 = vmatpush1.msra.mxu0 0.0
    %579 = vmatprep.subr.mxu0 0.0
    %580 = vmatpush1.msra.mxu0 0.0
    %581 = vmatprep.subr.mxu0 0.0
    %582 = vmatpush1.msra.mxu0 0.0
    %583 = vmatprep.subr.mxu0 0.0
    %584 = vmatpush1.msra.mxu0 0.0
    %585 = vmatprep.mubr.f32.mxu0 0.0
    %586 = vmatmul.mubr.f32.gmra.mrb[0].mxu0 %v306
    %v587 = vpop.f32.mrb[0].mxu0
    %v588 = vadd.f32 %v281, %v587
    %v589 = vpop.f32.mrb[0].mxu0
    %v590 = vadd.f32 %v285, %v589
    %591 = vdwg.mxu0
    %592 = vmatprep.subr.mxu0 %v219
    %593 = vmatpush1.msra.mxu0 %v218
    %594 = vmatprep.subr.mxu0 %v229
    %595 = vmatpush1.msra.mxu0 %v228
    %596 = vmatprep.subr.mxu0 %v239
    %597 = vmatpush1.msra.mxu0 %v238
    %598 = vmatprep.subr.mxu0 %v249
    %599 = vmatpush1.msra.mxu0 %v248
    %600 = vmatprep.subr.mxu0 0.0
    %601 = vmatpush1.msra.mxu0 0.0
    %602 = vmatprep.subr.mxu0 0.0
    %603 = vmatpush1.msra.mxu0 0.0
    %604 = vmatprep.subr.mxu0 0.0
    %605 = vmatpush1.msra.mxu0 0.0
    %606 = vmatprep.subr.mxu0 0.0
    %607 = vmatpush1.msra.mxu0 0.0
    %608 = vmatprep.subr.mxu0 0.0
    %609 = vmatpush1.msra.mxu0 0.0
    %610 = vmatprep.subr.mxu0 0.0
    %611 = vmatpush1.msra.mxu0 0.0
    %612 = vmatprep.subr.mxu0 0.0
    %613 = vmatpush1.msra.mxu0 0.0
    %614 = vmatprep.subr.mxu0 0.0
    %615 = vmatpush1.msra.mxu0 0.0
    %616 = vmatprep.subr.mxu0 0.0
    %617 = vmatpush1.msra.mxu0 0.0
    %618 = vmatprep.subr.mxu0 0.0
    %619 = vmatpush1.msra.mxu0 0.0
    %620 = vmatprep.subr.mxu0 0.0
    %621 = vmatpush1.msra.mxu0 0.0
    %622 = vmatprep.subr.mxu0 0.0
    %623 = vmatpush1.msra.mxu0 0.0
    %624 = vmatprep.subr.mxu0 0.0
    %625 = vmatpush1.msra.mxu0 0.0
    %626 = vmatprep.subr.mxu0 0.0
    %627 = vmatpush1.msra.mxu0 0.0
    %628 = vmatprep.subr.mxu0 0.0
    %629 = vmatpush1.msra.mxu0 0.0
    %630 = vmatprep.subr.mxu0 0.0
    %631 = vmatpush1.msra.mxu0 0.0
    %632 = vmatprep.subr.mxu0 0.0
    %633 = vmatpush1.msra.mxu0 0.0
    %634 = vmatprep.subr.mxu0 0.0
    %635 = vmatpush1.msra.mxu0 0.0
    %636 = vmatprep.subr.mxu0 0.0
    %637 = vmatpush1.msra.mxu0 0.0
    %638 = vmatprep.subr.mxu0 0.0
    %639 = vmatpush1.msra.mxu0 0.0
    %640 = vmatprep.subr.mxu0 0.0
    %641 = vmatpush1.msra.mxu0 0.0
    %642 = vmatprep.subr.mxu0 0.0
    %643 = vmatpush1.msra.mxu0 0.0
    %644 = vmatprep.subr.mxu0 0.0
    %645 = vmatpush1.msra.mxu0 0.0
    %646 = vmatprep.subr.mxu0 0.0
    %647 = vmatpush1.msra.mxu0 0.0
    %648 = vmatprep.subr.mxu0 0.0
    %649 = vmatpush1.msra.mxu0 0.0
    %650 = vmatprep.subr.mxu0 0.0
    %651 = vmatpush1.msra.mxu0 0.0
    %652 = vmatprep.subr.mxu0 0.0
    %653 = vmatpush1.msra.mxu0 0.0
    %654 = vmatprep.subr.mxu0 0.0
    %655 = vmatpush1.msra.mxu0 0.0
    %656 = vmatprep.mubr.f32.mxu0 0.0
    %657 = vmatmul.mubr.f32.gmra.mrb[0].mxu0 %v306
    %v658 = vpop.f32.mrb[0].mxu0
    %v659 = vadd.f32 %v289, %v658
    %v660 = vpop.f32.mrb[0].mxu0
    %v661 = vadd.f32 %v293, %v660
    %662 = vdwg.mxu0
    %v663 = vtanh.pop %v375
    %v664 = vtanh.pop %v377
    %v665 = vtanh.pop %v446
    %v666 = vtanh.pop %v448
    %v667 = vtanh.pop %v517
    %v668 = vtanh.pop %v519
    %v669 = vtanh.pop %v588
    %v670 = vtanh.pop %v590
    %v671 = vtanh.pop %v659
    %v672 = vtanh.pop %v661
    %v673 = vld [vmem:[#allocation11] sm:$0xff]
    %v674 = vld [vmem:[#allocation11 + $0x8] sm:$0xff]
    %v675 = vld [vmem:[#allocation11 + $0x10] sm:$0xff]
    %v676 = vld [vmem:[#allocation11 + $0x18] sm:$0xff]
    %v677 = vld [vmem:[#allocation11 + $0x20] sm:$0xff]
    %v678 = vld [vmem:[#allocation11 + $0x28] sm:$0xff]
    %v679 = vld [vmem:[#allocation11 + $0x30] sm:$0xff]
    %v680 = vld [vmem:[#allocation11 + $0x38] sm:$0xff]
    %v681 = vld [vmem:[#allocation11 + $0x40] sm:$0xff]
    %v682 = vld [vmem:[#allocation11 + $0x48] sm:$0xff]
    %v683 = vld [vmem:[#allocation11 + $0x50] sm:$0xff]
    %v684 = vld [vmem:[#allocation11 + $0x58] sm:$0xff]
    %v685 = vld [vmem:[#allocation11 + $0x60] sm:$0xff]
    %v686 = vld [vmem:[#allocation11 + $0x68] sm:$0xff]
    %v687 = vld [vmem:[#allocation11 + $0x70] sm:$0xff]
    %v688 = vld [vmem:[#allocation11 + $0x78] sm:$0xff]
    %v689 = vld [vmem:[%s5] sm:$0x1]
    %v690 = vlaneseq
    %v691 = vshrl.u32 %v690, 7
    %v692 = vsub.s32 0, %v691
    %v693 = vrot.slane %v689, %v692
    %694 = vmatprep.subr.mxu0 0.0
    %695 = vmatpush1.msra.mxu0 %v673
    %696 = vmatprep.subr.mxu0 0.0
    %697 = vmatpush1.msra.mxu0 %v674
    %698 = vmatprep.subr.mxu0 0.0
    %699 = vmatpush1.msra.mxu0 %v675
    %700 = vmatprep.subr.mxu0 0.0
    %701 = vmatpush1.msra.mxu0 %v676
    %702 = vmatprep.subr.mxu0 0.0
    %703 = vmatpush1.msra.mxu0 %v677
    %704 = vmatprep.subr.mxu0 0.0
    %705 = vmatpush1.msra.mxu0 %v678
    %706 = vmatprep.subr.mxu0 0.0
    %707 = vmatpush1.msra.mxu0 %v679
    %708 = vmatprep.subr.mxu0 0.0
    %709 = vmatpush1.msra.mxu0 %v680
    %710 = vmatprep.subr.mxu0 0.0
    %711 = vmatpush1.msra.mxu0 %v681
    %712 = vmatprep.subr.mxu0 0.0
    %713 = vmatpush1.msra.mxu0 %v682
    %714 = vmatprep.subr.mxu0 0.0
    %715 = vmatpush1.msra.mxu0 %v683
    %716 = vmatprep.subr.mxu0 0.0
    %717 = vmatpush1.msra.mxu0 %v684
    %718 = vmatprep.subr.mxu0 0.0
    %719 = vmatpush1.msra.mxu0 %v685
    %720 = vmatprep.subr.mxu0 0.0
    %721 = vmatpush1.msra.mxu0 %v686
    %722 = vmatprep.subr.mxu0 0.0
    %723 = vmatpush1.msra.mxu0 %v687
    %724 = vmatprep.subr.mxu0 0.0
    %725 = vmatpush1.msra.mxu0 %v688
    %726 = vmatprep.subr.mxu0 0.0
    %727 = vmatpush1.msra.mxu0 0.0
    %728 = vmatprep.subr.mxu0 0.0
    %729 = vmatpush1.msra.mxu0 0.0
    %730 = vmatprep.subr.mxu0 0.0
    %731 = vmatpush1.msra.mxu0 0.0
    %732 = vmatprep.subr.mxu0 0.0
    %733 = vmatpush1.msra.mxu0 0.0
    %734 = vmatprep.subr.mxu0 0.0
    %735 = vmatpush1.msra.mxu0 0.0
    %736 = vmatprep.subr.mxu0 0.0
    %737 = vmatpush1.msra.mxu0 0.0
    %738 = vmatprep.subr.mxu0 0.0
    %739 = vmatpush1.msra.mxu0 0.0
    %740 = vmatprep.subr.mxu0 0.0
    %741 = vmatpush1.msra.mxu0 0.0
    %742 = vmatprep.subr.mxu0 0.0
    %743 = vmatpush1.msra.mxu0 0.0
    %744 = vmatprep.subr.mxu0 0.0
    %745 = vmatpush1.msra.mxu0 0.0
    %746 = vmatprep.subr.mxu0 0.0
    %747 = vmatpush1.msra.mxu0 0.0
    %748 = vmatprep.subr.mxu0 0.0
    %749 = vmatpush1.msra.mxu0 0.0
    %750 = vmatprep.subr.mxu0 0.0
    %751 = vmatpush1.msra.mxu0 0.0
    %752 = vmatprep.subr.mxu0 0.0
    %753 = vmatpush1.msra.mxu0 0.0
    %754 = vmatprep.subr.mxu0 0.0
    %755 = vmatpush1.msra.mxu0 0.0
    %756 = vmatprep.subr.mxu0 0.0
    %757 = vmatpush1.msra.mxu0 0.0
    %758 = vmatprep.mubr.f32.mxu0 0.0
    %759 = vmatmul.mubr.f32.gmra.mrb[0].mxu0 %v663
    %v760 = vpop.f32.mrb[0].mxu0
    %v761 = vadd.f32 %v693, %v760
    %v762 = vpop.f32.mrb[0].mxu0
    %763 = vdwg.mxu0
    %764 = vst [vmem:[#allocation2] sm:$0xff] %v761
    %v765 = vmul.f32 %v761, %v207
    %766 = vadd.xlane.f32.xlu0 %v765
    %v767 = vpop.xlane.xlu0 %766
    %s768 = scalar_lea.vmem [#allocation11], 128
    %v769 = vld [vmem:[%s768] sm:$0xff]
    %v770 = vld [vmem:[%s768 + $0x8] sm:$0xff]
    %v771 = vld [vmem:[%s768 + $0x10] sm:$0xff]
    %v772 = vld [vmem:[%s768 + $0x18] sm:$0xff]
    %v773 = vld [vmem:[%s768 + $0x20] sm:$0xff]
    %v774 = vld [vmem:[%s768 + $0x28] sm:$0xff]
    %v775 = vld [vmem:[%s768 + $0x30] sm:$0xff]
    %v776 = vld [vmem:[%s768 + $0x38] sm:$0xff]
    %v777 = vld [vmem:[%s768 + $0x40] sm:$0xff]
    %v778 = vld [vmem:[%s768 + $0x48] sm:$0xff]
    %v779 = vld [vmem:[%s768 + $0x50] sm:$0xff]
    %v780 = vld [vmem:[%s768 + $0x58] sm:$0xff]
    %v781 = vld [vmem:[%s768 + $0x60] sm:$0xff]
    %v782 = vld [vmem:[%s768 + $0x68] sm:$0xff]
    %v783 = vld [vmem:[%s768 + $0x70] sm:$0xff]
    %v784 = vld [vmem:[%s768 + $0x78] sm:$0xff]
    %v785 = vld [vmem:[%s5 + $0x1] sm:$0x1]
    %v786 = vlaneseq
    %v787 = vshrl.u32 %v786, 7
    %v788 = vsub.s32 0, %v787
    %v789 = vrot.slane %v785, %v788
    %790 = vmatprep.subr.mxu0 0.0
    %791 = vmatpush1.msra.mxu0 %v769
    %792 = vmatprep.subr.mxu0 0.0
    %793 = vmatpush1.msra.mxu0 %v770
    %794 = vmatprep.subr.mxu0 0.0
    %795 = vmatpush1.msra.mxu0 %v771
    %796 = vmatprep.subr.mxu0 0.0
    %797 = vmatpush1.msra.mxu0 %v772
    %798 = vmatprep.subr.mxu0 0.0
    %799 = vmatpush1.msra.mxu0 %v773
    %800 = vmatprep.subr.mxu0 0.0
    %801 = vmatpush1.msra.mxu0 %v774
    %802 = vmatprep.subr.mxu0 0.0
    %803 = vmatpush1.msra.mxu0 %v775
    %804 = vmatprep.subr.mxu0 0.0
    %805 = vmatpush1.msra.mxu0 %v776
    %806 = vmatprep.subr.mxu0 0.0
    %807 = vmatpush1.msra.mxu0 %v777
    %808 = vmatprep.subr.mxu0 0.0
    %809 = vmatpush1.msra.mxu0 %v778
    %810 = vmatprep.subr.mxu0 0.0
    %811 = vmatpush1.msra.mxu0 %v779
    %812 = vmatprep.subr.mxu0 0.0
    %813 = vmatpush1.msra.mxu0 %v780
    %814 = vmatprep.subr.mxu0 0.0
    %815 = vmatpush1.msra.mxu0 %v781
    %816 = vmatprep.subr.mxu0 0.0
    %817 = vmatpush1.msra.mxu0 %v782
    %818 = vmatprep.subr.mxu0 0.0
    %819 = vmatpush1.msra.mxu0 %v783
    %820 = vmatprep.subr.mxu0 0.0
    %821 = vmatpush1.msra.mxu0 %v784
    %822 = vmatprep.subr.mxu0 0.0
    %823 = vmatpush1.msra.mxu0 0.0
    %824 = vmatprep.subr.mxu0 0.0
    %825 = vmatpush1.msra.mxu0 0.0
    %826 = vmatprep.subr.mxu0 0.0
    %827 = vmatpush1.msra.mxu0 0.0
    %828 = vmatprep.subr.mxu0 0.0
    %829 = vmatpush1.msra.mxu0 0.0
    %830 = vmatprep.subr.mxu0 0.0
    %831 = vmatpush1.msra.mxu0 0.0
    %832 = vmatprep.subr.mxu0 0.0
    %833 = vmatpush1.msra.mxu0 0.0
    %834 = vmatprep.subr.mxu0 0.0
    %835 = vmatpush1.msra.mxu0 0.0
    %836 = vmatprep.subr.mxu0 0.0
    %837 = vmatpush1.msra.mxu0 0.0
    %838 = vmatprep.subr.mxu0 0.0
    %839 = vmatpush1.msra.mxu0 0.0
    %840 = vmatprep.subr.mxu0 0.0
    %841 = vmatpush1.msra.mxu0 0.0
    %842 = vmatprep.subr.mxu0 0.0
    %843 = vmatpush1.msra.mxu0 0.0
    %844 = vmatprep.subr.mxu0 0.0
    %845 = vmatpush1.msra.mxu0 0.0
    %846 = vmatprep.subr.mxu0 0.0
    %847 = vmatpush1.msra.mxu0 0.0
    %848 = vmatprep.subr.mxu0 0.0
    %849 = vmatpush1.msra.mxu0 0.0
    %850 = vmatprep.subr.mxu0 0.0
    %851 = vmatpush1.msra.mxu0 0.0
    %852 = vmatprep.subr.mxu0 0.0
    %853 = vmatpush1.msra.mxu0 0.0
    %854 = vmatprep.mubr.f32.mxu0 0.0
    %855 = vmatmul.mubr.f32.gmra.mrb[0].mxu0 %v664
    %v856 = vpop.f32.mrb[0].mxu0
    %v857 = vadd.f32 %v789, %v856
    %v858 = vpop.f32.mrb[0].mxu0
    %859 = vdwg.mxu0
    %s860 = scalar_lea.vmem [#allocation2], 8
    %861 = vst [vmem:[%s860] sm:$0xff] %v857
    %v862 = vmul.f32 %v857, %v207
    %863 = vadd.xlane.f32.xlu0 %v862
    %v864 = vpop.xlane.xlu0 %863
    %v865 = vmax.f32 %v767, %v864
    %s866 = scalar_lea.vmem [#allocation11], 256
    %v867 = vld [vmem:[%s866] sm:$0xff]
    %v868 = vld [vmem:[%s866 + $0x8] sm:$0xff]
    %v869 = vld [vmem:[%s866 + $0x10] sm:$0xff]
    %v870 = vld [vmem:[%s866 + $0x18] sm:$0xff]
    %v871 = vld [vmem:[%s866 + $0x20] sm:$0xff]
    %v872 = vld [vmem:[%s866 + $0x28] sm:$0xff]
    %v873 = vld [vmem:[%s866 + $0x30] sm:$0xff]
    %v874 = vld [vmem:[%s866 + $0x38] sm:$0xff]
    %v875 = vld [vmem:[%s866 + $0x40] sm:$0xff]
    %v876 = vld [vmem:[%s866 + $0x48] sm:$0xff]
    %v877 = vld [vmem:[%s866 + $0x50] sm:$0xff]
    %v878 = vld [vmem:[%s866 + $0x58] sm:$0xff]
    %v879 = vld [vmem:[%s866 + $0x60] sm:$0xff]
    %v880 = vld [vmem:[%s866 + $0x68] sm:$0xff]
    %v881 = vld [vmem:[%s866 + $0x70] sm:$0xff]
    %v882 = vld [vmem:[%s866 + $0x78] sm:$0xff]
    %v883 = vld [vmem:[%s5 + $0x2] sm:$0x1]
    %v884 = vlaneseq
    %v885 = vshrl.u32 %v884, 7
    %v886 = vsub.s32 0, %v885
    %v887 = vrot.slane %v883, %v886
    %888 = vmatprep.subr.mxu0 0.0
    %889 = vmatpush1.msra.mxu0 %v867
    %890 = vmatprep.subr.mxu0 0.0
    %891 = vmatpush1.msra.mxu0 %v868
    %892 = vmatprep.subr.mxu0 0.0
    %893 = vmatpush1.msra.mxu0 %v869
    %894 = vmatprep.subr.mxu0 0.0
    %895 = vmatpush1.msra.mxu0 %v870
    %896 = vmatprep.subr.mxu0 0.0
    %897 = vmatpush1.msra.mxu0 %v871
    %898 = vmatprep.subr.mxu0 0.0
    %899 = vmatpush1.msra.mxu0 %v872
    %900 = vmatprep.subr.mxu0 0.0
    %901 = vmatpush1.msra.mxu0 %v873
    %902 = vmatprep.subr.mxu0 0.0
    %903 = vmatpush1.msra.mxu0 %v874
    %904 = vmatprep.subr.mxu0 0.0
    %905 = vmatpush1.msra.mxu0 %v875
    %906 = vmatprep.subr.mxu0 0.0
    %907 = vmatpush1.msra.mxu0 %v876
    %908 = vmatprep.subr.mxu0 0.0
    %909 = vmatpush1.msra.mxu0 %v877
    %910 = vmatprep.subr.mxu0 0.0
    %911 = vmatpush1.msra.mxu0 %v878
    %912 = vmatprep.subr.mxu0 0.0
    %913 = vmatpush1.msra.mxu0 %v879
    %914 = vmatprep.subr.mxu0 0.0
    %915 = vmatpush1.msra.mxu0 %v880
    %916 = vmatprep.subr.mxu0 0.0
    %917 = vmatpush1.msra.mxu0 %v881
    %918 = vmatprep.subr.mxu0 0.0
    %919 = vmatpush1.msra.mxu0 %v882
    %920 = vmatprep.subr.mxu0 0.0
    %921 = vmatpush1.msra.mxu0 0.0
    %922 = vmatprep.subr.mxu0 0.0
    %923 = vmatpush1.msra.mxu0 0.0
    %924 = vmatprep.subr.mxu0 0.0
    %925 = vmatpush1.msra.mxu0 0.0
    %926 = vmatprep.subr.mxu0 0.0
    %927 = vmatpush1.msra.mxu0 0.0
    %928 = vmatprep.subr.mxu0 0.0
    %929 = vmatpush1.msra.mxu0 0.0
    %930 = vmatprep.subr.mxu0 0.0
    %931 = vmatpush1.msra.mxu0 0.0
    %932 = vmatprep.subr.mxu0 0.0
    %933 = vmatpush1.msra.mxu0 0.0
    %934 = vmatprep.subr.mxu0 0.0
    %935 = vmatpush1.msra.mxu0 0.0
    %936 = vmatprep.subr.mxu0 0.0
    %937 = vmatpush1.msra.mxu0 0.0
    %938 = vmatprep.subr.mxu0 0.0
    %939 = vmatpush1.msra.mxu0 0.0
    %940 = vmatprep.subr.mxu0 0.0
    %941 = vmatpush1.msra.mxu0 0.0
    %942 = vmatprep.subr.mxu0 0.0
    %943 = vmatpush1.msra.mxu0 0.0
    %944 = vmatprep.subr.mxu0 0.0
    %945 = vmatpush1.msra.mxu0 0.0
    %946 = vmatprep.subr.mxu0 0.0
    %947 = vmatpush1.msra.mxu0 0.0
    %948 = vmatprep.subr.mxu0 0.0
    %949 = vmatpush1.msra.mxu0 0.0
    %950 = vmatprep.subr.mxu0 0.0
    %951 = vmatpush1.msra.mxu0 0.0
    %952 = vmatprep.mubr.f32.mxu0 0.0
    %953 = vmatmul.mubr.f32.gmra.mrb[0].mxu0 %v665
    %v954 = vpop.f32.mrb[0].mxu0
    %v955 = vadd.f32 %v887, %v954
    %v956 = vpop.f32.mrb[0].mxu0
    %957 = vdwg.mxu0
    %s958 = scalar_lea.vmem [#allocation2], 16
    %959 = vst [vmem:[%s958] sm:$0xff] %v955
    %v960 = vmul.f32 %v955, %v207
    %961 = vadd.xlane.f32.xlu0 %v960
    %v962 = vpop.xlane.xlu0 %961
    %v963 = vmax.f32 %v865, %v962
    %s964 = scalar_lea.vmem [#allocation11], 384
    %v965 = vld [vmem:[%s964] sm:$0xff]
    %v966 = vld [vmem:[%s964 + $0x8] sm:$0xff]
    %v967 = vld [vmem:[%s964 + $0x10] sm:$0xff]
    %v968 = vld [vmem:[%s964 + $0x18] sm:$0xff]
    %v969 = vld [vmem:[%s964 + $0x20] sm:$0xff]
    %v970 = vld [vmem:[%s964 + $0x28] sm:$0xff]
    %v971 = vld [vmem:[%s964 + $0x30] sm:$0xff]
    %v972 = vld [vmem:[%s964 + $0x38] sm:$0xff]
    %v973 = vld [vmem:[%s964 + $0x40] sm:$0xff]
    %v974 = vld [vmem:[%s964 + $0x48] sm:$0xff]
    %v975 = vld [vmem:[%s964 + $0x50] sm:$0xff]
    %v976 = vld [vmem:[%s964 + $0x58] sm:$0xff]
    %v977 = vld [vmem:[%s964 + $0x60] sm:$0xff]
    %v978 = vld [vmem:[%s964 + $0x68] sm:$0xff]
    %v979 = vld [vmem:[%s964 + $0x70] sm:$0xff]
    %v980 = vld [vmem:[%s964 + $0x78] sm:$0xff]
    %v981 = vld [vmem:[%s5 + $0x3] sm:$0x1]
    %v982 = vlaneseq
    %v983 = vshrl.u32 %v982, 7
    %v984 = vsub.s32 0, %v983
    %v985 = vrot.slane %v981, %v984
    %986 = vmatprep.subr.mxu0 0.0
    %987 = vmatpush1.msra.mxu0 %v965
    %988 = vmatprep.subr.mxu0 0.0
    %989 = vmatpush1.msra.mxu0 %v966
    %990 = vmatprep.subr.mxu0 0.0
    %991 = vmatpush1.msra.mxu0 %v967
    %992 = vmatprep.subr.mxu0 0.0
    %993 = vmatpush1.msra.mxu0 %v968
    %994 = vmatprep.subr.mxu0 0.0
    %995 = vmatpush1.msra.mxu0 %v969
    %996 = vmatprep.subr.mxu0 0.0
    %997 = vmatpush1.msra.mxu0 %v970
    %998 = vmatprep.subr.mxu0 0.0
    %999 = vmatpush1.msra.mxu0 %v971
    %1000 = vmatprep.subr.mxu0 0.0
    %1001 = vmatpush1.msra.mxu0 %v972
    %1002 = vmatprep.subr.mxu0 0.0
    %1003 = vmatpush1.msra.mxu0 %v973
    %1004 = vmatprep.subr.mxu0 0.0
    %1005 = vmatpush1.msra.mxu0 %v974
    %1006 = vmatprep.subr.mxu0 0.0
    %1007 = vmatpush1.msra.mxu0 %v975
    %1008 = vmatprep.subr.mxu0 0.0
    %1009 = vmatpush1.msra.mxu0 %v976
    %1010 = vmatprep.subr.mxu0 0.0
    %1011 = vmatpush1.msra.mxu0 %v977
    %1012 = vmatprep.subr.mxu0 0.0
    %1013 = vmatpush1.msra.mxu0 %v978
    %1014 = vmatprep.subr.mxu0 0.0
    %1015 = vmatpush1.msra.mxu0 %v979
    %1016 = vmatprep.subr.mxu0 0.0
    %1017 = vmatpush1.msra.mxu0 %v980
    %1018 = vmatprep.subr.mxu0 0.0
    %1019 = vmatpush1.msra.mxu0 0.0
    %1020 = vmatprep.subr.mxu0 0.0
    %1021 = vmatpush1.msra.mxu0 0.0
    %1022 = vmatprep.subr.mxu0 0.0
    %1023 = vmatpush1.msra.mxu0 0.0
    %1024 = vmatprep.subr.mxu0 0.0
    %1025 = vmatpush1.msra.mxu0 0.0
    %1026 = vmatprep.subr.mxu0 0.0
    %1027 = vmatpush1.msra.mxu0 0.0
    %1028 = vmatprep.subr.mxu0 0.0
    %1029 = vmatpush1.msra.mxu0 0.0
    %1030 = vmatprep.subr.mxu0 0.0
    %1031 = vmatpush1.msra.mxu0 0.0
    %1032 = vmatprep.subr.mxu0 0.0
    %1033 = vmatpush1.msra.mxu0 0.0
    %1034 = vmatprep.subr.mxu0 0.0
    %1035 = vmatpush1.msra.mxu0 0.0
    %1036 = vmatprep.subr.mxu0 0.0
    %1037 = vmatpush1.msra.mxu0 0.0
    %1038 = vmatprep.subr.mxu0 0.0
    %1039 = vmatpush1.msra.mxu0 0.0
    %1040 = vmatprep.subr.mxu0 0.0
    %1041 = vmatpush1.msra.mxu0 0.0
    %1042 = vmatprep.subr.mxu0 0.0
    %1043 = vmatpush1.msra.mxu0 0.0
    %1044 = vmatprep.subr.mxu0 0.0
    %1045 = vmatpush1.msra.mxu0 0.0
    %1046 = vmatprep.subr.mxu0 0.0
    %1047 = vmatpush1.msra.mxu0 0.0
    %1048 = vmatprep.subr.mxu0 0.0
    %1049 = vmatpush1.msra.mxu0 0.0
    %1050 = vmatprep.mubr.f32.mxu0 0.0
    %1051 = vmatmul.mubr.f32.gmra.mrb[0].mxu0 %v666
    %v1052 = vpop.f32.mrb[0].mxu0
    %v1053 = vadd.f32 %v985, %v1052
    %v1054 = vpop.f32.mrb[0].mxu0
    %1055 = vdwg.mxu0
    %s1056 = scalar_lea.vmem [#allocation2], 24
    %1057 = vst [vmem:[%s1056] sm:$0xff] %v1053
    %v1058 = vmul.f32 %v1053, %v207
    %1059 = vadd.xlane.f32.xlu0 %v1058
    %v1060 = vpop.xlane.xlu0 %1059
    %v1061 = vmax.f32 %v963, %v1060
    %s1062 = scalar_lea.vmem [#allocation11], 512
    %v1063 = vld [vmem:[%s1062] sm:$0xff]
    %v1064 = vld [vmem:[%s1062 + $0x8] sm:$0xff]
    %v1065 = vld [vmem:[%s1062 + $0x10] sm:$0xff]
    %v1066 = vld [vmem:[%s1062 + $0x18] sm:$0xff]
    %v1067 = vld [vmem:[%s1062 + $0x20] sm:$0xff]
    %v1068 = vld [vmem:[%s1062 + $0x28] sm:$0xff]
    %v1069 = vld [vmem:[%s1062 + $0x30] sm:$0xff]
    %v1070 = vld [vmem:[%s1062 + $0x38] sm:$0xff]
    %v1071 = vld [vmem:[%s1062 + $0x40] sm:$0xff]
    %v1072 = vld [vmem:[%s1062 + $0x48] sm:$0xff]
    %v1073 = vld [vmem:[%s1062 + $0x50] sm:$0xff]
    %v1074 = vld [vmem:[%s1062 + $0x58] sm:$0xff]
    %v1075 = vld [vmem:[%s1062 + $0x60] sm:$0xff]
    %v1076 = vld [vmem:[%s1062 + $0x68] sm:$0xff]
    %v1077 = vld [vmem:[%s1062 + $0x70] sm:$0xff]
    %v1078 = vld [vmem:[%s1062 + $0x78] sm:$0xff]
    %v1079 = vld [vmem:[%s5 + $0x4] sm:$0x1]
    %v1080 = vlaneseq
    %v1081 = vshrl.u32 %v1080, 7
    %v1082 = vsub.s32 0, %v1081
    %v1083 = vrot.slane %v1079, %v1082
    %1084 = vmatprep.subr.mxu0 0.0
    %1085 = vmatpush1.msra.mxu0 %v1063
    %1086 = vmatprep.subr.mxu0 0.0
    %1087 = vmatpush1.msra.mxu0 %v1064
    %1088 = vmatprep.subr.mxu0 0.0
    %1089 = vmatpush1.msra.mxu0 %v1065
    %1090 = vmatprep.subr.mxu0 0.0
    %1091 = vmatpush1.msra.mxu0 %v1066
    %1092 = vmatprep.subr.mxu0 0.0
    %1093 = vmatpush1.msra.mxu0 %v1067
    %1094 = vmatprep.subr.mxu0 0.0
    %1095 = vmatpush1.msra.mxu0 %v1068
    %1096 = vmatprep.subr.mxu0 0.0
    %1097 = vmatpush1.msra.mxu0 %v1069
    %1098 = vmatprep.subr.mxu0 0.0
    %1099 = vmatpush1.msra.mxu0 %v1070
    %1100 = vmatprep.subr.mxu0 0.0
    %1101 = vmatpush1.msra.mxu0 %v1071
    %1102 = vmatprep.subr.mxu0 0.0
    %1103 = vmatpush1.msra.mxu0 %v1072
    %1104 = vmatprep.subr.mxu0 0.0
    %1105 = vmatpush1.msra.mxu0 %v1073
    %1106 = vmatprep.subr.mxu0 0.0
    %1107 = vmatpush1.msra.mxu0 %v1074
    %1108 = vmatprep.subr.mxu0 0.0
    %1109 = vmatpush1.msra.mxu0 %v1075
    %1110 = vmatprep.subr.mxu0 0.0
    %1111 = vmatpush1.msra.mxu0 %v1076
    %1112 = vmatprep.subr.mxu0 0.0
    %1113 = vmatpush1.msra.mxu0 %v1077
    %1114 = vmatprep.subr.mxu0 0.0
    %1115 = vmatpush1.msra.mxu0 %v1078
    %1116 = vmatprep.subr.mxu0 0.0
    %1117 = vmatpush1.msra.mxu0 0.0
    %1118 = vmatprep.subr.mxu0 0.0
    %1119 = vmatpush1.msra.mxu0 0.0
    %1120 = vmatprep.subr.mxu0 0.0
    %1121 = vmatpush1.msra.mxu0 0.0
    %1122 = vmatprep.subr.mxu0 0.0
    %1123 = vmatpush1.msra.mxu0 0.0
    %1124 = vmatprep.subr.mxu0 0.0
    %1125 = vmatpush1.msra.mxu0 0.0
    %1126 = vmatprep.subr.mxu0 0.0
    %1127 = vmatpush1.msra.mxu0 0.0
    %1128 = vmatprep.subr.mxu0 0.0
    %1129 = vmatpush1.msra.mxu0 0.0
    %1130 = vmatprep.subr.mxu0 0.0
    %1131 = vmatpush1.msra.mxu0 0.0
    %1132 = vmatprep.subr.mxu0 0.0
    %1133 = vmatpush1.msra.mxu0 0.0
    %1134 = vmatprep.subr.mxu0 0.0
    %1135 = vmatpush1.msra.mxu0 0.0
    %1136 = vmatprep.subr.mxu0 0.0
    %1137 = vmatpush1.msra.mxu0 0.0
    %1138 = vmatprep.subr.mxu0 0.0
    %1139 = vmatpush1.msra.mxu0 0.0
    %1140 = vmatprep.subr.mxu0 0.0
    %1141 = vmatpush1.msra.mxu0 0.0
    %1142 = vmatprep.subr.mxu0 0.0
    %1143 = vmatpush1.msra.mxu0 0.0
    %1144 = vmatprep.subr.mxu0 0.0
    %1145 = vmatpush1.msra.mxu0 0.0
    %1146 = vmatprep.subr.mxu0 0.0
    %1147 = vmatpush1.msra.mxu0 0.0
    %1148 = vmatprep.mubr.f32.mxu0 0.0
    %1149 = vmatmul.mubr.f32.gmra.mrb[0].mxu0 %v667
    %v1150 = vpop.f32.mrb[0].mxu0
    %v1151 = vadd.f32 %v1083, %v1150
    %v1152 = vpop.f32.mrb[0].mxu0
    %1153 = vdwg.mxu0
    %s1154 = scalar_lea.vmem [#allocation2], 32
    %1155 = vst [vmem:[%s1154] sm:$0xff] %v1151
    %v1156 = vmul.f32 %v1151, %v207
    %1157 = vadd.xlane.f32.xlu0 %v1156
    %v1158 = vpop.xlane.xlu0 %1157
    %v1159 = vmax.f32 %v1061, %v1158
    %s1160 = scalar_lea.vmem [#allocation11], 640
    %v1161 = vld [vmem:[%s1160] sm:$0xff]
    %v1162 = vld [vmem:[%s1160 + $0x8] sm:$0xff]
    %v1163 = vld [vmem:[%s1160 + $0x10] sm:$0xff]
    %v1164 = vld [vmem:[%s1160 + $0x18] sm:$0xff]
    %v1165 = vld [vmem:[%s1160 + $0x20] sm:$0xff]
    %v1166 = vld [vmem:[%s1160 + $0x28] sm:$0xff]
    %v1167 = vld [vmem:[%s1160 + $0x30] sm:$0xff]
    %v1168 = vld [vmem:[%s1160 + $0x38] sm:$0xff]
    %v1169 = vld [vmem:[%s1160 + $0x40] sm:$0xff]
    %v1170 = vld [vmem:[%s1160 + $0x48] sm:$0xff]
    %v1171 = vld [vmem:[%s1160 + $0x50] sm:$0xff]
    %v1172 = vld [vmem:[%s1160 + $0x58] sm:$0xff]
    %v1173 = vld [vmem:[%s1160 + $0x60] sm:$0xff]
    %v1174 = vld [vmem:[%s1160 + $0x68] sm:$0xff]
    %v1175 = vld [vmem:[%s1160 + $0x70] sm:$0xff]
    %v1176 = vld [vmem:[%s1160 + $0x78] sm:$0xff]
    %v1177 = vld [vmem:[%s5 + $0x5] sm:$0x1]
    %v1178 = vlaneseq
    %v1179 = vshrl.u32 %v1178, 7
    %v1180 = vsub.s32 0, %v1179
    %v1181 = vrot.slane %v1177, %v1180
    %1182 = vmatprep.subr.mxu0 0.0
    %1183 = vmatpush1.msra.mxu0 %v1161
    %1184 = vmatprep.subr.mxu0 0.0
    %1185 = vmatpush1.msra.mxu0 %v1162
    %1186 = vmatprep.subr.mxu0 0.0
    %1187 = vmatpush1.msra.mxu0 %v1163
    %1188 = vmatprep.subr.mxu0 0.0
    %1189 = vmatpush1.msra.mxu0 %v1164
    %1190 = vmatprep.subr.mxu0 0.0
    %1191 = vmatpush1.msra.mxu0 %v1165
    %1192 = vmatprep.subr.mxu0 0.0
    %1193 = vmatpush1.msra.mxu0 %v1166
    %1194 = vmatprep.subr.mxu0 0.0
    %1195 = vmatpush1.msra.mxu0 %v1167
    %1196 = vmatprep.subr.mxu0 0.0
    %1197 = vmatpush1.msra.mxu0 %v1168
    %1198 = vmatprep.subr.mxu0 0.0
    %1199 = vmatpush1.msra.mxu0 %v1169
    %1200 = vmatprep.subr.mxu0 0.0
    %1201 = vmatpush1.msra.mxu0 %v1170
    %1202 = vmatprep.subr.mxu0 0.0
    %1203 = vmatpush1.msra.mxu0 %v1171
    %1204 = vmatprep.subr.mxu0 0.0
    %1205 = vmatpush1.msra.mxu0 %v1172
    %1206 = vmatprep.subr.mxu0 0.0
    %1207 = vmatpush1.msra.mxu0 %v1173
    %1208 = vmatprep.subr.mxu0 0.0
    %1209 = vmatpush1.msra.mxu0 %v1174
    %1210 = vmatprep.subr.mxu0 0.0
    %1211 = vmatpush1.msra.mxu0 %v1175
    %1212 = vmatprep.subr.mxu0 0.0
    %1213 = vmatpush1.msra.mxu0 %v1176
    %1214 = vmatprep.subr.mxu0 0.0
    %1215 = vmatpush1.msra.mxu0 0.0
    %1216 = vmatprep.subr.mxu0 0.0
    %1217 = vmatpush1.msra.mxu0 0.0
    %1218 = vmatprep.subr.mxu0 0.0
    %1219 = vmatpush1.msra.mxu0 0.0
    %1220 = vmatprep.subr.mxu0 0.0
    %1221 = vmatpush1.msra.mxu0 0.0
    %1222 = vmatprep.subr.mxu0 0.0
    %1223 = vmatpush1.msra.mxu0 0.0
    %1224 = vmatprep.subr.mxu0 0.0
    %1225 = vmatpush1.msra.mxu0 0.0
    %1226 = vmatprep.subr.mxu0 0.0
    %1227 = vmatpush1.msra.mxu0 0.0
    %1228 = vmatprep.subr.mxu0 0.0
    %1229 = vmatpush1.msra.mxu0 0.0
    %1230 = vmatprep.subr.mxu0 0.0
    %1231 = vmatpush1.msra.mxu0 0.0
    %1232 = vmatprep.subr.mxu0 0.0
    %1233 = vmatpush1.msra.mxu0 0.0
    %1234 = vmatprep.subr.mxu0 0.0
    %1235 = vmatpush1.msra.mxu0 0.0
    %1236 = vmatprep.subr.mxu0 0.0
    %1237 = vmatpush1.msra.mxu0 0.0
    %1238 = vmatprep.subr.mxu0 0.0
    %1239 = vmatpush1.msra.mxu0 0.0
    %1240 = vmatprep.subr.mxu0 0.0
    %1241 = vmatpush1.msra.mxu0 0.0
    %1242 = vmatprep.subr.mxu0 0.0
    %1243 = vmatpush1.msra.mxu0 0.0
    %1244 = vmatprep.subr.mxu0 0.0
    %1245 = vmatpush1.msra.mxu0 0.0
    %1246 = vmatprep.mubr.f32.mxu0 0.0
    %1247 = vmatmul.mubr.f32.gmra.mrb[0].mxu0 %v668
    %v1248 = vpop.f32.mrb[0].mxu0
    %v1249 = vadd.f32 %v1181, %v1248
    %v1250 = vpop.f32.mrb[0].mxu0
    %1251 = vdwg.mxu0
    %s1252 = scalar_lea.vmem [#allocation2], 40
    %1253 = vst [vmem:[%s1252] sm:$0xff] %v1249
    %v1254 = vmul.f32 %v1249, %v207
    %1255 = vadd.xlane.f32.xlu0 %v1254
    %v1256 = vpop.xlane.xlu0 %1255
    %v1257 = vmax.f32 %v1159, %v1256
    %s1258 = scalar_lea.vmem [#allocation11], 768
    %v1259 = vld [vmem:[%s1258] sm:$0xff]
    %v1260 = vld [vmem:[%s1258 + $0x8] sm:$0xff]
    %v1261 = vld [vmem:[%s1258 + $0x10] sm:$0xff]
    %v1262 = vld [vmem:[%s1258 + $0x18] sm:$0xff]
    %v1263 = vld [vmem:[%s1258 + $0x20] sm:$0xff]
    %v1264 = vld [vmem:[%s1258 + $0x28] sm:$0xff]
    %v1265 = vld [vmem:[%s1258 + $0x30] sm:$0xff]
    %v1266 = vld [vmem:[%s1258 + $0x38] sm:$0xff]
    %v1267 = vld [vmem:[%s1258 + $0x40] sm:$0xff]
    %v1268 = vld [vmem:[%s1258 + $0x48] sm:$0xff]
    %v1269 = vld [vmem:[%s1258 + $0x50] sm:$0xff]
    %v1270 = vld [vmem:[%s1258 + $0x58] sm:$0xff]
    %v1271 = vld [vmem:[%s1258 + $0x60] sm:$0xff]
    %v1272 = vld [vmem:[%s1258 + $0x68] sm:$0xff]
    %v1273 = vld [vmem:[%s1258 + $0x70] sm:$0xff]
    %v1274 = vld [vmem:[%s1258 + $0x78] sm:$0xff]
    %v1275 = vld [vmem:[%s5 + $0x6] sm:$0x1]
    %v1276 = vlaneseq
    %v1277 = vshrl.u32 %v1276, 7
    %v1278 = vsub.s32 0, %v1277
    %v1279 = vrot.slane %v1275, %v1278
    %1280 = vmatprep.subr.mxu0 0.0
    %1281 = vmatpush1.msra.mxu0 %v1259
    %1282 = vmatprep.subr.mxu0 0.0
    %1283 = vmatpush1.msra.mxu0 %v1260
    %1284 = vmatprep.subr.mxu0 0.0
    %1285 = vmatpush1.msra.mxu0 %v1261
    %1286 = vmatprep.subr.mxu0 0.0
    %1287 = vmatpush1.msra.mxu0 %v1262
    %1288 = vmatprep.subr.mxu0 0.0
    %1289 = vmatpush1.msra.mxu0 %v1263
    %1290 = vmatprep.subr.mxu0 0.0
    %1291 = vmatpush1.msra.mxu0 %v1264
    %1292 = vmatprep.subr.mxu0 0.0
    %1293 = vmatpush1.msra.mxu0 %v1265
    %1294 = vmatprep.subr.mxu0 0.0
    %1295 = vmatpush1.msra.mxu0 %v1266
    %1296 = vmatprep.subr.mxu0 0.0
    %1297 = vmatpush1.msra.mxu0 %v1267
    %1298 = vmatprep.subr.mxu0 0.0
    %1299 = vmatpush1.msra.mxu0 %v1268
    %1300 = vmatprep.subr.mxu0 0.0
    %1301 = vmatpush1.msra.mxu0 %v1269
    %1302 = vmatprep.subr.mxu0 0.0
    %1303 = vmatpush1.msra.mxu0 %v1270
    %1304 = vmatprep.subr.mxu0 0.0
    %1305 = vmatpush1.msra.mxu0 %v1271
    %1306 = vmatprep.subr.mxu0 0.0
    %1307 = vmatpush1.msra.mxu0 %v1272
    %1308 = vmatprep.subr.mxu0 0.0
    %1309 = vmatpush1.msra.mxu0 %v1273
    %1310 = vmatprep.subr.mxu0 0.0
    %1311 = vmatpush1.msra.mxu0 %v1274
    %1312 = vmatprep.subr.mxu0 0.0
    %1313 = vmatpush1.msra.mxu0 0.0
    %1314 = vmatprep.subr.mxu0 0.0
    %1315 = vmatpush1.msra.mxu0 0.0
    %1316 = vmatprep.subr.mxu0 0.0
    %1317 = vmatpush1.msra.mxu0 0.0
    %1318 = vmatprep.subr.mxu0 0.0
    %1319 = vmatpush1.msra.mxu0 0.0
    %1320 = vmatprep.subr.mxu0 0.0
    %1321 = vmatpush1.msra.mxu0 0.0
    %1322 = vmatprep.subr.mxu0 0.0
    %1323 = vmatpush1.msra.mxu0 0.0
    %1324 = vmatprep.subr.mxu0 0.0
    %1325 = vmatpush1.msra.mxu0 0.0
    %1326 = vmatprep.subr.mxu0 0.0
    %1327 = vmatpush1.msra.mxu0 0.0
    %1328 = vmatprep.subr.mxu0 0.0
    %1329 = vmatpush1.msra.mxu0 0.0
    %1330 = vmatprep.subr.mxu0 0.0
    %1331 = vmatpush1.msra.mxu0 0.0
    %1332 = vmatprep.subr.mxu0 0.0
    %1333 = vmatpush1.msra.mxu0 0.0
    %1334 = vmatprep.subr.mxu0 0.0
    %1335 = vmatpush1.msra.mxu0 0.0
    %1336 = vmatprep.subr.mxu0 0.0
    %1337 = vmatpush1.msra.mxu0 0.0
    %1338 = vmatprep.subr.mxu0 0.0
    %1339 = vmatpush1.msra.mxu0 0.0
    %1340 = vmatprep.subr.mxu0 0.0
    %1341 = vmatpush1.msra.mxu0 0.0
    %1342 = vmatprep.subr.mxu0 0.0
    %1343 = vmatpush1.msra.mxu0 0.0
    %1344 = vmatprep.mubr.f32.mxu0 0.0
    %1345 = vmatmul.mubr.f32.gmra.mrb[0].mxu0 %v669
    %v1346 = vpop.f32.mrb[0].mxu0
    %v1347 = vadd.f32 %v1279, %v1346
    %v1348 = vpop.f32.mrb[0].mxu0
    %1349 = vdwg.mxu0
    %s1350 = scalar_lea.vmem [#allocation2], 48
    %1351 = vst [vmem:[%s1350] sm:$0xff] %v1347
    %v1352 = vmul.f32 %v1347, %v207
    %1353 = vadd.xlane.f32.xlu0 %v1352
    %v1354 = vpop.xlane.xlu0 %1353
    %v1355 = vmax.f32 %v1257, %v1354
    %s1356 = scalar_lea.vmem [#allocation11], 896
    %v1357 = vld [vmem:[%s1356] sm:$0xff]
    %v1358 = vld [vmem:[%s1356 + $0x8] sm:$0xff]
    %v1359 = vld [vmem:[%s1356 + $0x10] sm:$0xff]
    %v1360 = vld [vmem:[%s1356 + $0x18] sm:$0xff]
    %v1361 = vld [vmem:[%s1356 + $0x20] sm:$0xff]
    %v1362 = vld [vmem:[%s1356 + $0x28] sm:$0xff]
    %v1363 = vld [vmem:[%s1356 + $0x30] sm:$0xff]
    %v1364 = vld [vmem:[%s1356 + $0x38] sm:$0xff]
    %v1365 = vld [vmem:[%s1356 + $0x40] sm:$0xff]
    %v1366 = vld [vmem:[%s1356 + $0x48] sm:$0xff]
    %v1367 = vld [vmem:[%s1356 + $0x50] sm:$0xff]
    %v1368 = vld [vmem:[%s1356 + $0x58] sm:$0xff]
    %v1369 = vld [vmem:[%s1356 + $0x60] sm:$0xff]
    %v1370 = vld [vmem:[%s1356 + $0x68] sm:$0xff]
    %v1371 = vld [vmem:[%s1356 + $0x70] sm:$0xff]
    %v1372 = vld [vmem:[%s1356 + $0x78] sm:$0xff]
    %v1373 = vld [vmem:[%s5 + $0x7] sm:$0x1]
    %v1374 = vlaneseq
    %v1375 = vshrl.u32 %v1374, 7
    %v1376 = vsub.s32 0, %v1375
    %v1377 = vrot.slane %v1373, %v1376
    %1378 = vmatprep.subr.mxu0 0.0
    %1379 = vmatpush1.msra.mxu0 %v1357
    %1380 = vmatprep.subr.mxu0 0.0
    %1381 = vmatpush1.msra.mxu0 %v1358
    %1382 = vmatprep.subr.mxu0 0.0
    %1383 = vmatpush1.msra.mxu0 %v1359
    %1384 = vmatprep.subr.mxu0 0.0
    %1385 = vmatpush1.msra.mxu0 %v1360
    %1386 = vmatprep.subr.mxu0 0.0
    %1387 = vmatpush1.msra.mxu0 %v1361
    %1388 = vmatprep.subr.mxu0 0.0
    %1389 = vmatpush1.msra.mxu0 %v1362
    %1390 = vmatprep.subr.mxu0 0.0
    %1391 = vmatpush1.msra.mxu0 %v1363
    %1392 = vmatprep.subr.mxu0 0.0
    %1393 = vmatpush1.msra.mxu0 %v1364
    %1394 = vmatprep.subr.mxu0 0.0
    %1395 = vmatpush1.msra.mxu0 %v1365
    %1396 = vmatprep.subr.mxu0 0.0
    %1397 = vmatpush1.msra.mxu0 %v1366
    %1398 = vmatprep.subr.mxu0 0.0
    %1399 = vmatpush1.msra.mxu0 %v1367
    %1400 = vmatprep.subr.mxu0 0.0
    %1401 = vmatpush1.msra.mxu0 %v1368
    %1402 = vmatprep.subr.mxu0 0.0
    %1403 = vmatpush1.msra.mxu0 %v1369
    %1404 = vmatprep.subr.mxu0 0.0
    %1405 = vmatpush1.msra.mxu0 %v1370
    %1406 = vmatprep.subr.mxu0 0.0
    %1407 = vmatpush1.msra.mxu0 %v1371
    %1408 = vmatprep.subr.mxu0 0.0
    %1409 = vmatpush1.msra.mxu0 %v1372
    %1410 = vmatprep.subr.mxu0 0.0
    %1411 = vmatpush1.msra.mxu0 0.0
    %1412 = vmatprep.subr.mxu0 0.0
    %1413 = vmatpush1.msra.mxu0 0.0
    %1414 = vmatprep.subr.mxu0 0.0
    %1415 = vmatpush1.msra.mxu0 0.0
    %1416 = vmatprep.subr.mxu0 0.0
    %1417 = vmatpush1.msra.mxu0 0.0
    %1418 = vmatprep.subr.mxu0 0.0
    %1419 = vmatpush1.msra.mxu0 0.0
    %1420 = vmatprep.subr.mxu0 0.0
    %1421 = vmatpush1.msra.mxu0 0.0
    %1422 = vmatprep.subr.mxu0 0.0
    %1423 = vmatpush1.msra.mxu0 0.0
    %1424 = vmatprep.subr.mxu0 0.0
    %1425 = vmatpush1.msra.mxu0 0.0
    %1426 = vmatprep.subr.mxu0 0.0
    %1427 = vmatpush1.msra.mxu0 0.0
    %1428 = vmatprep.subr.mxu0 0.0
    %1429 = vmatpush1.msra.mxu0 0.0
    %1430 = vmatprep.subr.mxu0 0.0
    %1431 = vmatpush1.msra.mxu0 0.0
    %1432 = vmatprep.subr.mxu0 0.0
    %1433 = vmatpush1.msra.mxu0 0.0
    %1434 = vmatprep.subr.mxu0 0.0
    %1435 = vmatpush1.msra.mxu0 0.0
    %1436 = vmatprep.subr.mxu0 0.0
    %1437 = vmatpush1.msra.mxu0 0.0
    %1438 = vmatprep.subr.mxu0 0.0
    %1439 = vmatpush1.msra.mxu0 0.0
    %1440 = vmatprep.subr.mxu0 0.0
    %1441 = vmatpush1.msra.mxu0 0.0
    %1442 = vmatprep.mubr.f32.mxu0 0.0
    %1443 = vmatmul.mubr.f32.gmra.mrb[0].mxu0 %v670
    %v1444 = vpop.f32.mrb[0].mxu0
    %v1445 = vadd.f32 %v1377, %v1444
    %v1446 = vpop.f32.mrb[0].mxu0
    %1447 = vdwg.mxu0
    %s1448 = scalar_lea.vmem [#allocation2], 56
    %1449 = vst [vmem:[%s1448] sm:$0xff] %v1445
    %v1450 = vmul.f32 %v1445, %v207
    %1451 = vadd.xlane.f32.xlu0 %v1450
    %v1452 = vpop.xlane.xlu0 %1451
    %v1453 = vmax.f32 %v1355, %v1452
    %s1454 = scalar_lea.vmem [#allocation11], 1024
    %v1455 = vld [vmem:[%s1454] sm:$0xff]
    %v1456 = vld [vmem:[%s1454 + $0x8] sm:$0xff]
    %v1457 = vld [vmem:[%s1454 + $0x10] sm:$0xff]
    %v1458 = vld [vmem:[%s1454 + $0x18] sm:$0xff]
    %v1459 = vld [vmem:[%s1454 + $0x20] sm:$0xff]
    %v1460 = vld [vmem:[%s1454 + $0x28] sm:$0xff]
    %v1461 = vld [vmem:[%s1454 + $0x30] sm:$0xff]
    %v1462 = vld [vmem:[%s1454 + $0x38] sm:$0xff]
    %v1463 = vld [vmem:[%s1454 + $0x40] sm:$0xff]
    %v1464 = vld [vmem:[%s1454 + $0x48] sm:$0xff]
    %v1465 = vld [vmem:[%s1454 + $0x50] sm:$0xff]
    %v1466 = vld [vmem:[%s1454 + $0x58] sm:$0xff]
    %v1467 = vld [vmem:[%s1454 + $0x60] sm:$0xff]
    %v1468 = vld [vmem:[%s1454 + $0x68] sm:$0xff]
    %v1469 = vld [vmem:[%s1454 + $0x70] sm:$0xff]
    %v1470 = vld [vmem:[%s1454 + $0x78] sm:$0xff]
    %v1471 = vld [vmem:[%s5 + $0x8] sm:$0x1]
    %v1472 = vlaneseq
    %v1473 = vshrl.u32 %v1472, 7
    %v1474 = vsub.s32 0, %v1473
    %v1475 = vrot.slane %v1471, %v1474
    %1476 = vmatprep.subr.mxu0 0.0
    %1477 = vmatpush1.msra.mxu0 %v1455
    %1478 = vmatprep.subr.mxu0 0.0
    %1479 = vmatpush1.msra.mxu0 %v1456
    %1480 = vmatprep.subr.mxu0 0.0
    %1481 = vmatpush1.msra.mxu0 %v1457
    %1482 = vmatprep.subr.mxu0 0.0
    %1483 = vmatpush1.msra.mxu0 %v1458
    %1484 = vmatprep.subr.mxu0 0.0
    %1485 = vmatpush1.msra.mxu0 %v1459
    %1486 = vmatprep.subr.mxu0 0.0
    %1487 = vmatpush1.msra.mxu0 %v1460
    %1488 = vmatprep.subr.mxu0 0.0
    %1489 = vmatpush1.msra.mxu0 %v1461
    %1490 = vmatprep.subr.mxu0 0.0
    %1491 = vmatpush1.msra.mxu0 %v1462
    %1492 = vmatprep.subr.mxu0 0.0
    %1493 = vmatpush1.msra.mxu0 %v1463
    %1494 = vmatprep.subr.mxu0 0.0
    %1495 = vmatpush1.msra.mxu0 %v1464
    %1496 = vmatprep.subr.mxu0 0.0
    %1497 = vmatpush1.msra.mxu0 %v1465
    %1498 = vmatprep.subr.mxu0 0.0
    %1499 = vmatpush1.msra.mxu0 %v1466
    %1500 = vmatprep.subr.mxu0 0.0
    %1501 = vmatpush1.msra.mxu0 %v1467
    %1502 = vmatprep.subr.mxu0 0.0
    %1503 = vmatpush1.msra.mxu0 %v1468
    %1504 = vmatprep.subr.mxu0 0.0
    %1505 = vmatpush1.msra.mxu0 %v1469
    %1506 = vmatprep.subr.mxu0 0.0
    %1507 = vmatpush1.msra.mxu0 %v1470
    %1508 = vmatprep.subr.mxu0 0.0
    %1509 = vmatpush1.msra.mxu0 0.0
    %1510 = vmatprep.subr.mxu0 0.0
    %1511 = vmatpush1.msra.mxu0 0.0
    %1512 = vmatprep.subr.mxu0 0.0
    %1513 = vmatpush1.msra.mxu0 0.0
    %1514 = vmatprep.subr.mxu0 0.0
    %1515 = vmatpush1.msra.mxu0 0.0
    %1516 = vmatprep.subr.mxu0 0.0
    %1517 = vmatpush1.msra.mxu0 0.0
    %1518 = vmatprep.subr.mxu0 0.0
    %1519 = vmatpush1.msra.mxu0 0.0
    %1520 = vmatprep.subr.mxu0 0.0
    %1521 = vmatpush1.msra.mxu0 0.0
    %1522 = vmatprep.subr.mxu0 0.0
    %1523 = vmatpush1.msra.mxu0 0.0
    %1524 = vmatprep.subr.mxu0 0.0
    %1525 = vmatpush1.msra.mxu0 0.0
    %1526 = vmatprep.subr.mxu0 0.0
    %1527 = vmatpush1.msra.mxu0 0.0
    %1528 = vmatprep.subr.mxu0 0.0
    %1529 = vmatpush1.msra.mxu0 0.0
    %1530 = vmatprep.subr.mxu0 0.0
    %1531 = vmatpush1.msra.mxu0 0.0
    %1532 = vmatprep.subr.mxu0 0.0
    %1533 = vmatpush1.msra.mxu0 0.0
    %1534 = vmatprep.subr.mxu0 0.0
    %1535 = vmatpush1.msra.mxu0 0.0
    %1536 = vmatprep.subr.mxu0 0.0
    %1537 = vmatpush1.msra.mxu0 0.0
    %1538 = vmatprep.subr.mxu0 0.0
    %1539 = vmatpush1.msra.mxu0 0.0
    %1540 = vmatprep.mubr.f32.mxu0 0.0
    %1541 = vmatmul.mubr.f32.gmra.mrb[0].mxu0 %v671
    %v1542 = vpop.f32.mrb[0].mxu0
    %v1543 = vadd.f32 %v1475, %v1542
    %v1544 = vpop.f32.mrb[0].mxu0
    %1545 = vdwg.mxu0
    %s1546 = scalar_lea.vmem [#allocation2], 64
    %1547 = vst [vmem:[%s1546] sm:$0xff] %v1543
    %v1548 = vmul.f32 %v1543, %v207
    %1549 = vadd.xlane.f32.xlu0 %v1548
    %v1550 = vpop.xlane.xlu0 %1549
    %v1551 = vmax.f32 %v1453, %v1550
    %s1552 = scalar_lea.vmem [#allocation11], 1152
    %v1553 = vld [vmem:[%s1552] sm:$0xff]
    %v1554 = vld [vmem:[%s1552 + $0x8] sm:$0xff]
    %v1555 = vld [vmem:[%s1552 + $0x10] sm:$0xff]
    %v1556 = vld [vmem:[%s1552 + $0x18] sm:$0xff]
    %v1557 = vld [vmem:[%s1552 + $0x20] sm:$0xff]
    %v1558 = vld [vmem:[%s1552 + $0x28] sm:$0xff]
    %v1559 = vld [vmem:[%s1552 + $0x30] sm:$0xff]
    %v1560 = vld [vmem:[%s1552 + $0x38] sm:$0xff]
    %v1561 = vld [vmem:[%s1552 + $0x40] sm:$0xff]
    %v1562 = vld [vmem:[%s1552 + $0x48] sm:$0xff]
    %v1563 = vld [vmem:[%s1552 + $0x50] sm:$0xff]
    %v1564 = vld [vmem:[%s1552 + $0x58] sm:$0xff]
    %v1565 = vld [vmem:[%s1552 + $0x60] sm:$0xff]
    %v1566 = vld [vmem:[%s1552 + $0x68] sm:$0xff]
    %v1567 = vld [vmem:[%s1552 + $0x70] sm:$0xff]
    %v1568 = vld [vmem:[%s1552 + $0x78] sm:$0xff]
    %v1569 = vld [vmem:[%s5 + $0x9] sm:$0x1]
    %v1570 = vlaneseq
    %v1571 = vshrl.u32 %v1570, 7
    %v1572 = vsub.s32 0, %v1571
    %v1573 = vrot.slane %v1569, %v1572
    %1574 = vmatprep.subr.mxu0 0.0
    %1575 = vmatpush1.msra.mxu0 %v1553
    %1576 = vmatprep.subr.mxu0 0.0
    %1577 = vmatpush1.msra.mxu0 %v1554
    %1578 = vmatprep.subr.mxu0 0.0
    %1579 = vmatpush1.msra.mxu0 %v1555
    %1580 = vmatprep.subr.mxu0 0.0
    %1581 = vmatpush1.msra.mxu0 %v1556
    %1582 = vmatprep.subr.mxu0 0.0
    %1583 = vmatpush1.msra.mxu0 %v1557
    %1584 = vmatprep.subr.mxu0 0.0
    %1585 = vmatpush1.msra.mxu0 %v1558
    %1586 = vmatprep.subr.mxu0 0.0
    %1587 = vmatpush1.msra.mxu0 %v1559
    %1588 = vmatprep.subr.mxu0 0.0
    %1589 = vmatpush1.msra.mxu0 %v1560
    %1590 = vmatprep.subr.mxu0 0.0
    %1591 = vmatpush1.msra.mxu0 %v1561
    %1592 = vmatprep.subr.mxu0 0.0
    %1593 = vmatpush1.msra.mxu0 %v1562
    %1594 = vmatprep.subr.mxu0 0.0
    %1595 = vmatpush1.msra.mxu0 %v1563
    %1596 = vmatprep.subr.mxu0 0.0
    %1597 = vmatpush1.msra.mxu0 %v1564
    %1598 = vmatprep.subr.mxu0 0.0
    %1599 = vmatpush1.msra.mxu0 %v1565
    %1600 = vmatprep.subr.mxu0 0.0
    %1601 = vmatpush1.msra.mxu0 %v1566
    %1602 = vmatprep.subr.mxu0 0.0
    %1603 = vmatpush1.msra.mxu0 %v1567
    %1604 = vmatprep.subr.mxu0 0.0
    %1605 = vmatpush1.msra.mxu0 %v1568
    %1606 = vmatprep.subr.mxu0 0.0
    %1607 = vmatpush1.msra.mxu0 0.0
    %1608 = vmatprep.subr.mxu0 0.0
    %1609 = vmatpush1.msra.mxu0 0.0
    %1610 = vmatprep.subr.mxu0 0.0
    %1611 = vmatpush1.msra.mxu0 0.0
    %1612 = vmatprep.subr.mxu0 0.0
    %1613 = vmatpush1.msra.mxu0 0.0
    %1614 = vmatprep.subr.mxu0 0.0
    %1615 = vmatpush1.msra.mxu0 0.0
    %1616 = vmatprep.subr.mxu0 0.0
    %1617 = vmatpush1.msra.mxu0 0.0
    %1618 = vmatprep.subr.mxu0 0.0
    %1619 = vmatpush1.msra.mxu0 0.0
    %1620 = vmatprep.subr.mxu0 0.0
    %1621 = vmatpush1.msra.mxu0 0.0
    %1622 = vmatprep.subr.mxu0 0.0
    %1623 = vmatpush1.msra.mxu0 0.0
    %1624 = vmatprep.subr.mxu0 0.0
    %1625 = vmatpush1.msra.mxu0 0.0
    %1626 = vmatprep.subr.mxu0 0.0
    %1627 = vmatpush1.msra.mxu0 0.0
    %1628 = vmatprep.subr.mxu0 0.0
    %1629 = vmatpush1.msra.mxu0 0.0
    %1630 = vmatprep.subr.mxu0 0.0
    %1631 = vmatpush1.msra.mxu0 0.0
    %1632 = vmatprep.subr.mxu0 0.0
    %1633 = vmatpush1.msra.mxu0 0.0
    %1634 = vmatprep.subr.mxu0 0.0
    %1635 = vmatpush1.msra.mxu0 0.0
    %1636 = vmatprep.subr.mxu0 0.0
    %1637 = vmatpush1.msra.mxu0 0.0
    %1638 = vmatprep.mubr.f32.mxu0 0.0
    %1639 = vmatmul.mubr.f32.gmra.mrb[0].mxu0 %v672
    %v1640 = vpop.f32.mrb[0].mxu0
    %v1641 = vadd.f32 %v1573, %v1640
    %v1642 = vpop.f32.mrb[0].mxu0
    %1643 = vdwg.mxu0
    %s1644 = scalar_lea.vmem [#allocation2], 72
    %1645 = vst [vmem:[%s1644] sm:$0xff] %v1641
    %v1646 = vmul.f32 %v1641, %v207
    %1647 = vadd.xlane.f32.xlu0 %v1646
    %v1648 = vpop.xlane.xlu0 %1647
    %v1649 = vmax.f32 %v1551, %v1648
    %v1650 = vsub.f32 %v767, %v1649
    %v1651 = vmul.f32 %v1650, 1.442695
    %v1652 = vpow.pop %v1651
    %v1653 = vsub.f32 %v864, %v1649
    %v1654 = vmul.f32 %v1653, 1.442695
    %v1655 = vpow.pop %v1654
    %v1656 = vsub.f32 %v962, %v1649
    %v1657 = vmul.f32 %v1656, 1.442695
    %v1658 = vpow.pop %v1657
    %v1659 = vsub.f32 %v1060, %v1649
    %v1660 = vmul.f32 %v1659, 1.442695
    %v1661 = vpow.pop %v1660
    %v1662 = vsub.f32 %v1158, %v1649
    %v1663 = vmul.f32 %v1662, 1.442695
    %v1664 = vpow.pop %v1663
    %v1665 = vsub.f32 %v1256, %v1649
    %v1666 = vmul.f32 %v1665, 1.442695
    %v1667 = vpow.pop %v1666
    %v1668 = vsub.f32 %v1354, %v1649
    %v1669 = vmul.f32 %v1668, 1.442695
    %v1670 = vpow.pop %v1669
    %v1671 = vsub.f32 %v1452, %v1649
    %v1672 = vmul.f32 %v1671, 1.442695
    %v1673 = vpow.pop %v1672
    %v1674 = vsub.f32 %v1550, %v1649
    %v1675 = vmul.f32 %v1674, 1.442695
    %v1676 = vpow.pop %v1675
    %v1677 = vsub.f32 %v1648, %v1649
    %v1678 = vmul.f32 %v1677, 1.442695
    %v1679 = vpow.pop %v1678
    %v1680 = vadd.f32 %v1652, %v1655
    %v1681 = vadd.f32 %v1680, %v1658
    %v1682 = vadd.f32 %v1681, %v1661
    %v1683 = vadd.f32 %v1682, %v1664
    %v1684 = vadd.f32 %v1683, %v1667
    %v1685 = vadd.f32 %v1684, %v1670
    %v1686 = vadd.f32 %v1685, %v1673
    %v1687 = vadd.f32 %v1686, %v1676
    %v1688 = vadd.f32 %v1687, %v1679
    %v1689 = vld [vmem:[#allocation2] sm:$0xff]
    %v1690 = vmul.f32 %v1652, %v1689
    %v1691 = vld [vmem:[%s860] sm:$0xff]
    %v1692 = vmul.f32 %v1655, %v1691
    %v1693 = vadd.f32 %v1690, %v1692
    %v1694 = vld [vmem:[%s958] sm:$0xff]
    %v1695 = vmul.f32 %v1658, %v1694
    %v1696 = vadd.f32 %v1693, %v1695
    %v1697 = vld [vmem:[%s1056] sm:$0xff]
    %v1698 = vmul.f32 %v1661, %v1697
    %v1699 = vadd.f32 %v1696, %v1698
    %v1700 = vld [vmem:[%s1154] sm:$0xff]
    %v1701 = vmul.f32 %v1664, %v1700
    %v1702 = vadd.f32 %v1699, %v1701
    %v1703 = vld [vmem:[%s1252] sm:$0xff]
    %v1704 = vmul.f32 %v1667, %v1703
    %v1705 = vadd.f32 %v1702, %v1704
    %v1706 = vld [vmem:[%s1350] sm:$0xff]
    %v1707 = vmul.f32 %v1670, %v1706
    %v1708 = vadd.f32 %v1705, %v1707
    %v1709 = vld [vmem:[%s1448] sm:$0xff]
    %v1710 = vmul.f32 %v1673, %v1709
    %v1711 = vadd.f32 %v1708, %v1710
    %v1712 = vld [vmem:[%s1546] sm:$0xff]
    %v1713 = vmul.f32 %v1676, %v1712
    %v1714 = vadd.f32 %v1711, %v1713
    %v1715 = vld [vmem:[%s1644] sm:$0xff]
    %v1716 = vmul.f32 %v1679, %v1715
    %v1717 = vadd.f32 %v1714, %v1716
    %v1718 = vrcp.pop %v1688
    %v1719 = vmul.f32 %v1717, %v1718
    %v1720 = vld [vmem:[#allocation14] sm:$0xff]
    %v1721 = vld [vmem:[#allocation14 + $0x8] sm:$0xff]
    %v1722 = vld [vmem:[#allocation14 + $0x10] sm:$0xff]
    %v1723 = vld [vmem:[#allocation14 + $0x18] sm:$0xff]
    %v1724 = vld [vmem:[#allocation14 + $0x20] sm:$0xff]
    %v1725 = vld [vmem:[#allocation14 + $0x28] sm:$0xff]
    %v1726 = vld [vmem:[#allocation14 + $0x30] sm:$0xff]
    %v1727 = vld [vmem:[#allocation14 + $0x38] sm:$0xff]
    %v1728 = vld [vmem:[#allocation14 + $0x40] sm:$0xff]
    %v1729 = vld [vmem:[#allocation14 + $0x48] sm:$0xff]
    %v1730 = vld [vmem:[#allocation14 + $0x50] sm:$0xff]
    %v1731 = vld [vmem:[#allocation14 + $0x58] sm:$0xff]
    %v1732 = vld [vmem:[#allocation14 + $0x60] sm:$0xff]
    %v1733 = vld [vmem:[#allocation14 + $0x68] sm:$0xff]
    %v1734 = vld [vmem:[#allocation14 + $0x70] sm:$0xff]
    %v1735 = vld [vmem:[#allocation14 + $0x78] sm:$0xff]
    %v1736 = vld [vmem:[%s9] sm:$0x1]
    %v1738 = vlaneseq
    %v1739 = vshrl.u32 %v1738, 7
    %v1740 = vsub.s32 0, %v1739
    %v1741 = vrot.slane %v1736, %v1740
    %1743 = vmatprep.subr.mxu0 0.0
    %1744 = vmatpush1.msra.mxu0 %v1720
    %1745 = vmatprep.subr.mxu0 0.0
    %1746 = vmatpush1.msra.mxu0 %v1721
    %1747 = vmatprep.subr.mxu0 0.0
    %1748 = vmatpush1.msra.mxu0 %v1722
    %1749 = vmatprep.subr.mxu0 0.0
    %1750 = vmatpush1.msra.mxu0 %v1723
    %1751 = vmatprep.subr.mxu0 0.0
    %1752 = vmatpush1.msra.mxu0 %v1724
    %1753 = vmatprep.subr.mxu0 0.0
    %1754 = vmatpush1.msra.mxu0 %v1725
    %1755 = vmatprep.subr.mxu0 0.0
    %1756 = vmatpush1.msra.mxu0 %v1726
    %1757 = vmatprep.subr.mxu0 0.0
    %1758 = vmatpush1.msra.mxu0 %v1727
    %1759 = vmatprep.subr.mxu0 0.0
    %1760 = vmatpush1.msra.mxu0 %v1728
    %1761 = vmatprep.subr.mxu0 0.0
    %1762 = vmatpush1.msra.mxu0 %v1729
    %1763 = vmatprep.subr.mxu0 0.0
    %1764 = vmatpush1.msra.mxu0 %v1730
    %1765 = vmatprep.subr.mxu0 0.0
    %1766 = vmatpush1.msra.mxu0 %v1731
    %1767 = vmatprep.subr.mxu0 0.0
    %1768 = vmatpush1.msra.mxu0 %v1732
    %1769 = vmatprep.subr.mxu0 0.0
    %1770 = vmatpush1.msra.mxu0 %v1733
    %1771 = vmatprep.subr.mxu0 0.0
    %1772 = vmatpush1.msra.mxu0 %v1734
    %1773 = vmatprep.subr.mxu0 0.0
    %1774 = vmatpush1.msra.mxu0 %v1735
    %1775 = vmatprep.subr.mxu0 0.0
    %1776 = vmatpush1.msra.mxu0 0.0
    %1777 = vmatprep.subr.mxu0 0.0
    %1778 = vmatpush1.msra.mxu0 0.0
    %1779 = vmatprep.subr.mxu0 0.0
    %1780 = vmatpush1.msra.mxu0 0.0
    %1781 = vmatprep.subr.mxu0 0.0
    %1782 = vmatpush1.msra.mxu0 0.0
    %1783 = vmatprep.subr.mxu0 0.0
    %1784 = vmatpush1.msra.mxu0 0.0
    %1785 = vmatprep.subr.mxu0 0.0
    %1786 = vmatpush1.msra.mxu0 0.0
    %1787 = vmatprep.subr.mxu0 0.0
    %1788 = vmatpush1.msra.mxu0 0.0
    %1789 = vmatprep.subr.mxu0 0.0
    %1790 = vmatpush1.msra.mxu0 0.0
    %1791 = vmatprep.subr.mxu0 0.0
    %1792 = vmatpush1.msra.mxu0 0.0
    %1793 = vmatprep.subr.mxu0 0.0
    %1794 = vmatpush1.msra.mxu0 0.0
    %1795 = vmatprep.subr.mxu0 0.0
    %1796 = vmatpush1.msra.mxu0 0.0
    %1797 = vmatprep.subr.mxu0 0.0
    %1798 = vmatpush1.msra.mxu0 0.0
    %1799 = vmatprep.subr.mxu0 0.0
    %1800 = vmatpush1.msra.mxu0 0.0
    %1801 = vmatprep.subr.mxu0 0.0
    %1802 = vmatpush1.msra.mxu0 0.0
    %1803 = vmatprep.subr.mxu0 0.0
    %1804 = vmatpush1.msra.mxu0 0.0
    %1805 = vmatprep.subr.mxu0 0.0
    %1806 = vmatpush1.msra.mxu0 0.0
    %1807 = vmatprep.mubr.f32.mxu0 0.0
    %1808 = vmatmul.mubr.f32.gmra.mrb[0].mxu0 %v1719
    %v1809 = vpop.f32.mrb[0].mxu0
    %v1810 = vadd.f32 %v1741, %v1809
    %v1811 = vpop.f32.mrb[0].mxu0
    %1812 = vdwg.mxu0
    %v1813 = vtanh.pop %v1810
    %1814 = vst [vmem:[#allocation15] sm:$0xff] %v207
    %1815 = vst [vmem:[#allocation15 + $0x8] sm:$0xff] %v1813
    // Predicated region
    $region70: #{tpu_custom_call.1} parent=1 // pred_check
      _
    $region71: #{tpu_custom_call.1} parent=1 // pred_check_branch
      %1817 = sbr.rel (0) target = $region73
    $region72: #{tpu_custom_call.1} parent=1 // pred_region
      %s1819 = ssub.s32 256, 256
      %1820 = vsyncadd [#allocation5], %s1819
      %s1822 = sshll.u32 [#allocation15], 4
      %s1823 = int_to_ptr.vmem [resolvable:$true] %s1822
      %1825 = dma.vmem_to_hbm [thread:$0]  %s1823, 256, %s10, [#allocation5]
    $region73: #{tpu_custom_call.1} parent=1 // pred_fallthru
      _
    // Predicated region
    $region74: #{tpu_custom_call.1} parent=1 // pred_check
      _
    $region75: #{tpu_custom_call.1} parent=1 // pred_check_branch
      %1827 = sbr.rel (0) target = $region77
    $region76: #{tpu_custom_call.1} parent=1 // pred_region
      %1828 = dma.done [#allocation5], 256
    $region77: #{tpu_custom_call.1} parent=1 // pred_fallthru
      _
    %1829 = vsyncpa [#allocation4], 1
    %1830 = vsyncpa [#allocation7], 1
    %1831 = vsyncpa [#allocation10], 1
    %1832 = vsyncpa [#allocation13], 1
    %1833 = vsyncpa [#allocation5], 1

</llo_original>
